<compile_context>
chip_gen: v6e
topology: v6e:2x2x1
jax: 0.10.0
libtpu: 0.0.40
codegen_flags: <defaults>
</compile_context>

<pallas_src>
import jax
import jax.numpy as jnp
from jax.experimental import pallas as pl
from jax.experimental.pallas import tpu as pltpu

HIDDEN = 512
N_CH_IN = 5   # channel dim of raw input; first channel is dropped
N_STAT = 4    # channels kept after x[:, :, 1:]
N_OUT = 4


def lin1_kernel(x_ref, w1_ref, w2_ref, w3_ref, b_ref, o_ref):
    # x_ref : [B, 4, T] f32   (channel 0 already dropped; time on the lane axis)
    # w1_ref: [16, 512] bf16, w2_ref: [512, 512] bf16
    # w3_ref: [512, 4]  bf16  (S already folded in)
    # b_ref : [3, 512]  f32   rows = (b1, b2, b3' padded with zeros)
    x = x_ref[...]
    T = x.shape[-1]

    _min = jnp.min(x, axis=-1)                               # [B, 4]
    _max = jnp.max(x, axis=-1)                               # [B, 4]
    _mean = jnp.mean(x, axis=-1)                             # [B, 4]
    diff = x - _mean[:, :, None]
    _var = jnp.sum(diff * diff, axis=-1) / jnp.float32(T - 1)  # torch.std: ddof=1
    _std = jnp.sqrt(_var)                                    # [B, 4]

    bf16 = jnp.bfloat16
    # First layer as four static row-slices of W1; order matches
    # torch.cat([min, max, mean, std], -1) of the original module.
    h = (
        jnp.dot(_min.astype(bf16), w1_ref[0:4, :],
                preferred_element_type=jnp.float32)
        + jnp.dot(_max.astype(bf16), w1_ref[4:8, :],
                  preferred_element_type=jnp.float32)
        + jnp.dot(_mean.astype(bf16), w1_ref[8:12, :],
                  preferred_element_type=jnp.float32)
        + jnp.dot(_std.astype(bf16), w1_ref[12:16, :],
                  preferred_element_type=jnp.float32)
    )
    h = jnp.maximum(h + b_ref[0:1, :], 0.0)                  # [B, 512]

    h = jnp.dot(h.astype(bf16), w2_ref[...],
                preferred_element_type=jnp.float32)
    h = jnp.maximum(h + b_ref[1:2, :], 0.0)                  # [B, 512]

    out = jnp.dot(h.astype(bf16), w3_ref[...],
                  preferred_element_type=jnp.float32)        # S folded into W3
    o_ref[...] = out + b_ref[2:3, 0:N_OUT]                   # b3*S + M folded in


def lin1_prepare_params(w1, b1, w2, b2, w3, b3, S, M):
    """One-time param prep: fold S/M into layer 3, pack biases, cast weights to bf16."""
    w3_f = w3 * S                                   # [512, 4] * [1, 4]
    b3_f = b3 * S + M                               # [1, 4]
    biases = jnp.zeros((3, HIDDEN), dtype=jnp.float32)
    biases = biases.at[0, :].set(b1[0])
    biases = biases.at[1, :].set(b2[0])
    biases = biases.at[2, :N_OUT].set(b3_f[0])
    return (w1.astype(jnp.bfloat16),
            w2.astype(jnp.bfloat16),
            w3_f.astype(jnp.bfloat16),
            biases)


@jax.jit
def lin1_forward(x, w1_bf16, w2_bf16, w3_bf16, biases):
    # x: [B, T, 5]. Drop channel 0 and put time on the lane axis outside the
    # kernel (layout plumbing is cheaper in XLA than a lane shuffle in-kernel).
    B, T, _ = x.shape
    xt = jnp.transpose(x[:, :, 1:], (0, 2, 1))      # [B, 4, T]

    vmem = pl.BlockSpec(memory_space=pltpu.MemorySpace.VMEM)
    flops = 2 * B * (4 * N_STAT * HIDDEN + HIDDEN * HIDDEN + HIDDEN * N_OUT)
    bytes_accessed = (
        xt.size * 4                                           # input f32
        + (4 * N_STAT * HIDDEN + HIDDEN * HIDDEN + HIDDEN * N_OUT) * 2  # bf16 weights
        + 3 * HIDDEN * 4                                      # packed biases f32
        + B * N_OUT * 4)                                      # output f32

    return pl.pallas_call(
        lin1_kernel,
        out_shape=jax.ShapeDtypeStruct((B, N_OUT), jnp.float32),
        in_specs=[vmem] * 5,
        out_specs=vmem,
        cost_estimate=pl.CostEstimate(
            flops=flops, transcendentals=0, bytes_accessed=bytes_accessed),
    )(xt, w1_bf16, w2_bf16, w3_bf16, biases)
    # TODO(synk): if batch grows beyond a few hundred rows, add a grid over B
    # with dimension_semantics=("parallel",) so v7x's two TensorCores split it.


def _reference_f32(x, w1, b1, w2, b2, w3, b3, S, M):
    """Exact f32 semantics of the PyTorch module."""
    xs = x[:, :, 1:]
    T = xs.shape[1]
    _min = jnp.min(xs, axis=1)
    _max = jnp.max(xs, axis=1)
    _mean = jnp.mean(xs, axis=1)
    _std = jnp.sqrt(jnp.sum((xs - _mean[:, None, :]) ** 2, axis=1) / (T - 1))
    feat = jnp.concatenate([_min, _max, _mean, _std], axis=-1)
    h = jax.nn.relu(feat @ w1 + b1)
    h = jax.nn.relu(h @ w2 + b2)
    out = h @ w3 + b3
    return out * S + M


def _reference_bf16(x, w1, b1, w2, b2, w3, b3, S, M):
    """Same math with the bf16 weight/activation casting used by the kernel."""
    bf16 = jnp.bfloat16
    xs = x[:, :, 1:]
    T = xs.shape[1]
    _min = jnp.min(xs, axis=1)
    _max = jnp.max(xs, axis=1)
    _mean = jnp.mean(xs, axis=1)
    _std = jnp.sqrt(jnp.sum((xs - _mean[:, None, :]) ** 2, axis=1) / (T - 1))
    feat = jnp.concatenate([_min, _max, _mean, _std], axis=-1)
    w3_f = (w3 * S).astype(bf16)
    b3_f = b3 * S + M
    h = jax.nn.relu(jnp.dot(feat.astype(bf16), w1.astype(bf16),
                            preferred_element_type=jnp.float32) + b1)
    h = jax.nn.relu(jnp.dot(h.astype(bf16), w2.astype(bf16),
                            preferred_element_type=jnp.float32) + b2)
    return jnp.dot(h.astype(bf16), w3_f,
                   preferred_element_type=jnp.float32) + b3_f


if __name__ == "__main__":
    key = jax.random.PRNGKey(0)
    kx, k1, k2, k3, kb1, kb2, kb3 = jax.random.split(key, 7)

    B, T = 8, 16
    x = jax.random.normal(kx, (B, T, N_CH_IN), dtype=jnp.float32)

    # Deterministic synthetic parameters (shapes match nn.Linear in __init__),
    # stored as [in, out] for direct matmul in the kernel.
    w1 = jax.random.normal(k1, (4 * N_STAT, HIDDEN), dtype=jnp.float32) * 0.05
    b1 = jax.random.normal(kb1, (1, HIDDEN), dtype=jnp.float32) * 0.05
    w2 = jax.random.normal(k2, (HIDDEN, HIDDEN), dtype=jnp.float32) * 0.05
    b2 = jax.random.normal(kb2, (1, HIDDEN), dtype=jnp.float32) * 0.05
    w3 = jax.random.normal(k3, (HIDDEN, N_OUT), dtype=jnp.float32) * 0.05
    b3 = jax.random.normal(kb3, (1, N_OUT), dtype=jnp.float32) * 0.05

    # Synthetic stand-ins for the label-stats file (mean M, scale S).
    M = jnp.array([[0.1, -0.2, 0.3, 0.0]], dtype=jnp.float32)
    S = jnp.array([[1.5, 0.5, 2.0, 1.0]], dtype=jnp.float32)

    w1_b, w2_b, w3_b, biases = lin1_prepare_params(w1, b1, w2, b2, w3, b3, S, M)
    out = lin1_forward(x, w1_b, w2_b, w3_b, biases)
    out = jax.block_until_ready(out)

    assert out.shape == (B, N_OUT)

    # Tight check vs. a reference that uses the same bf16 weight/act casting.
    ref_bf16 = _reference_bf16(x, w1, b1, w2, b2, w3, b3, S, M)
    assert jnp.max(jnp.abs(out - ref_bf16)) < 2e-3, float(
        jnp.max(jnp.abs(out - ref_bf16)))

    # Sanity check vs. the exact f32 module semantics (loose: bf16 weights).
    ref_f32 = _reference_f32(x, w1, b1, w2, b2, w3, b3, S, M)
    assert jnp.max(jnp.abs(out - ref_f32)) < 5e-2, float(
        jnp.max(jnp.abs(out - ref_f32)))

    print("KERNEL_OK")
</pallas_src>

<mosaic_0001>
module attributes {stable_mosaic.version = 11 : i64} {
  func.func @lin1_kernel(%arg0: memref<8x4x16xf32, #tpu.memory_space<vmem>>, %arg1: memref<16x512xbf16, #tpu.memory_space<vmem>>, %arg2: memref<512x512xbf16, #tpu.memory_space<vmem>>, %arg3: memref<512x4xbf16, #tpu.memory_space<vmem>>, %arg4: memref<3x512xf32, #tpu.memory_space<vmem>>, %arg5: memref<8x4xf32, #tpu.memory_space<vmem>>) attributes {dimension_semantics = [], scalar_prefetch = 0 : i64, scratch_operands = 0 : i64, tpu.core_type = #tpu.core_type<tc>} {
    %c0 = arith.constant 0 : index
    %c0_0 = arith.constant 0 : index
    %c0_1 = arith.constant 0 : index
    %0 = vector.load %arg0[%c0, %c0_0, %c0_1] : memref<8x4x16xf32, #tpu.memory_space<vmem>>, vector<8x4x16xf32>
    %cst = arith.constant dense<0x7F800000> : vector<8x4xf32>
    %1 = vector.multi_reduction <minimumf>, %0, %cst [2] : vector<8x4x16xf32> to vector<8x4xf32>
    %cst_2 = arith.constant dense<0xFF800000> : vector<8x4xf32>
    %2 = vector.multi_reduction <maximumf>, %0, %cst_2 [2] : vector<8x4x16xf32> to vector<8x4xf32>
    %cst_3 = arith.constant dense<0.000000e+00> : vector<8x4xf32>
    %3 = vector.multi_reduction <add>, %0, %cst_3 [2] : vector<8x4x16xf32> to vector<8x4xf32>
    %cst_4 = arith.constant 1.600000e+01 : f32
    %4 = vector.broadcast %cst_4 : f32 to vector<8x4xf32>
    %5 = arith.divf %3, %4 : vector<8x4xf32>
    %6 = vector.shape_cast %5 : vector<8x4xf32> to vector<8x4x1xf32>
    %7 = vector.broadcast %6 : vector<8x4x1xf32> to vector<8x4x16xf32>
    %8 = arith.subf %0, %7 : vector<8x4x16xf32>
    %9 = arith.mulf %8, %8 : vector<8x4x16xf32>
    %cst_5 = arith.constant dense<0.000000e+00> : vector<8x4xf32>
    %10 = vector.multi_reduction <add>, %9, %cst_5 [2] : vector<8x4x16xf32> to vector<8x4xf32>
    %cst_6 = arith.constant 1.500000e+01 : f32
    %11 = vector.broadcast %cst_6 : f32 to vector<8x4xf32>
    %12 = arith.divf %10, %11 : vector<8x4xf32>
    %13 = math.sqrt %12 : vector<8x4xf32>
    %14 = arith.truncf %1 : vector<8x4xf32> to vector<8x4xbf16>
    %c0_7 = arith.constant 0 : index
    %c0_8 = arith.constant 0 : index
    %15 = vector.load %arg1[%c0_7, %c0_8] : memref<16x512xbf16, #tpu.memory_space<vmem>>, vector<4x512xbf16>
    %cst_9 = arith.constant dense<0.000000e+00> : vector<8x512xf32>
    %16 = tpu.matmul %14, %15, %cst_9 {dimension_numbers = #tpu.dot_dimension_numbers<[1], [0], [0], [1], [0, 0, 1, 1], [], []>} : vector<8x4xbf16>, vector<4x512xbf16>, vector<8x512xf32> -> vector<8x512xf32>
    %17 = arith.truncf %2 : vector<8x4xf32> to vector<8x4xbf16>
    %c4 = arith.constant 4 : index
    %c0_10 = arith.constant 0 : index
    %18 = vector.load %arg1[%c4, %c0_10] : memref<16x512xbf16, #tpu.memory_space<vmem>>, vector<4x512xbf16>
    %cst_11 = arith.constant dense<0.000000e+00> : vector<8x512xf32>
    %19 = tpu.matmul %17, %18, %cst_11 {dimension_numbers = #tpu.dot_dimension_numbers<[1], [0], [0], [1], [0, 0, 1, 1], [], []>} : vector<8x4xbf16>, vector<4x512xbf16>, vector<8x512xf32> -> vector<8x512xf32>
    %20 = arith.addf %16, %19 : vector<8x512xf32>
    %21 = arith.truncf %5 : vector<8x4xf32> to vector<8x4xbf16>
    %c8 = arith.constant 8 : index
    %c0_12 = arith.constant 0 : index
    %22 = vector.load %arg1[%c8, %c0_12] : memref<16x512xbf16, #tpu.memory_space<vmem>>, vector<4x512xbf16>
    %cst_13 = arith.constant dense<0.000000e+00> : vector<8x512xf32>
    %23 = tpu.matmul %21, %22, %cst_13 {dimension_numbers = #tpu.dot_dimension_numbers<[1], [0], [0], [1], [0, 0, 1, 1], [], []>} : vector<8x4xbf16>, vector<4x512xbf16>, vector<8x512xf32> -> vector<8x512xf32>
    %24 = arith.addf %20, %23 : vector<8x512xf32>
    %25 = arith.truncf %13 : vector<8x4xf32> to vector<8x4xbf16>
    %c12 = arith.constant 12 : index
    %c0_14 = arith.constant 0 : index
    %26 = vector.load %arg1[%c12, %c0_14] : memref<16x512xbf16, #tpu.memory_space<vmem>>, vector<4x512xbf16>
    %cst_15 = arith.constant dense<0.000000e+00> : vector<8x512xf32>
    %27 = tpu.matmul %25, %26, %cst_15 {dimension_numbers = #tpu.dot_dimension_numbers<[1], [0], [0], [1], [0, 0, 1, 1], [], []>} : vector<8x4xbf16>, vector<4x512xbf16>, vector<8x512xf32> -> vector<8x512xf32>
    %28 = arith.addf %24, %27 : vector<8x512xf32>
    %c0_16 = arith.constant 0 : index
    %c0_17 = arith.constant 0 : index
    %29 = vector.load %arg4[%c0_16, %c0_17] : memref<3x512xf32, #tpu.memory_space<vmem>>, vector<1x512xf32>
    %30 = vector.broadcast %29 : vector<1x512xf32> to vector<8x512xf32>
    %31 = arith.addf %28, %30 : vector<8x512xf32>
    %cst_18 = arith.constant 0.000000e+00 : f32
    %32 = vector.broadcast %cst_18 : f32 to vector<8x512xf32>
    %33 = arith.maximumf %31, %32 : vector<8x512xf32>
    %34 = arith.truncf %33 : vector<8x512xf32> to vector<8x512xbf16>
    %c0_19 = arith.constant 0 : index
    %c0_20 = arith.constant 0 : index
    %35 = vector.load %arg2[%c0_19, %c0_20] : memref<512x512xbf16, #tpu.memory_space<vmem>>, vector<512x512xbf16>
    %cst_21 = arith.constant dense<0.000000e+00> : vector<8x512xf32>
    %36 = tpu.matmul %34, %35, %cst_21 {dimension_numbers = #tpu.dot_dimension_numbers<[1], [0], [0], [1], [0, 0, 1, 1], [], []>} : vector<8x512xbf16>, vector<512x512xbf16>, vector<8x512xf32> -> vector<8x512xf32>
    %c1 = arith.constant 1 : index
    %c0_22 = arith.constant 0 : index
    %37 = vector.load %arg4[%c1, %c0_22] : memref<3x512xf32, #tpu.memory_space<vmem>>, vector<1x512xf32>
    %38 = vector.broadcast %37 : vector<1x512xf32> to vector<8x512xf32>
    %39 = arith.addf %36, %38 : vector<8x512xf32>
    %cst_23 = arith.constant 0.000000e+00 : f32
    %40 = vector.broadcast %cst_23 : f32 to vector<8x512xf32>
    %41 = arith.maximumf %39, %40 : vector<8x512xf32>
    %42 = arith.truncf %41 : vector<8x512xf32> to vector<8x512xbf16>
    %c0_24 = arith.constant 0 : index
    %c0_25 = arith.constant 0 : index
    %43 = vector.load %arg3[%c0_24, %c0_25] : memref<512x4xbf16, #tpu.memory_space<vmem>>, vector<512x4xbf16>
    %cst_26 = arith.constant dense<0.000000e+00> : vector<8x4xf32>
    %44 = tpu.matmul %42, %43, %cst_26 {dimension_numbers = #tpu.dot_dimension_numbers<[1], [0], [0], [1], [0, 0, 1, 1], [], []>} : vector<8x512xbf16>, vector<512x4xbf16>, vector<8x4xf32> -> vector<8x4xf32>
    %c2 = arith.constant 2 : index
    %c0_27 = arith.constant 0 : index
    %45 = vector.load %arg4[%c2, %c0_27] : memref<3x512xf32, #tpu.memory_space<vmem>>, vector<1x4xf32>
    %46 = vector.broadcast %45 : vector<1x4xf32> to vector<8x4xf32>
    %47 = arith.addf %44, %46 : vector<8x4xf32>
    %c0_28 = arith.constant 0 : index
    %c0_29 = arith.constant 0 : index
    %48 = vector.load %arg5[%c0_28, %c0_29] : memref<8x4xf32, #tpu.memory_space<vmem>>, vector<8x4xf32>
    tpu.vector_store %arg5[%c0_28, %c0_29], %47 {strides = array<i32>} : memref<8x4xf32, #tpu.memory_space<vmem>>, vector<8x4xf32>,
    return
  }
}

</mosaic_0001>

<llo_original>
// kernel: lin1_forward.1
$region0: #{lin1_forward.1}
  #allocation0 [shape = 'u32[]', space=smem, size = 0x4, offset = 0x4, fixed_abs, tag = 'smem constant byte address 0x4 - core index']
  #allocation1 [shape = 'u32[144,128]{1,0:T(1,128)}', space=vmem, size = 0x12000, scoped, tag = 'internal scratch']
  %s0 = inlined_call_operand.vmem [shape: f32[8,4,16], index: 0, kind: input, shape index: {}]
  %s1 = inlined_call_operand.vmem [shape: bf16[16,512], index: 1, kind: input, shape index: {}]
  %s2 = inlined_call_operand.hbm [shape: bf16[512,512], index: 2, kind: input, shape index: {}]
  %s3 = inlined_call_operand.vmem [shape: bf16[512,4], index: 3, kind: input, shape index: {}]
  %s4 = inlined_call_operand.vmem [shape: f32[3,512], index: 4, kind: input, shape index: {}]
  %s5 = inlined_call_operand.vmem [shape: f32[8,4], index: 5, kind: output, shape index: {}]
  %s6 = sld [smem:[#allocation0]]
  $region34: #{lin1_forward.1} parent=0
    _
  %s8 = ssub.s32 1, %s6
  %s9 = scalar_select 0, %s8, %s6
  $region1: #{lin1_forward.1} parent=0
    #allocation2 [shape = 'u8[524288]{0}', space=vmem, size = 0x80000, scoped, tag = 'input window, operand 2, single buffered']
    #allocation3 [shape = 's32[1]{0}', space=sflag, size = 0x4, scoped, tag = 'scoped memory for lin1_forward.1']
    %10 = vsyncpa [#allocation3], 0
    // Predicated region
    $region2: #{lin1_forward.1} parent=1 // pred_check
      _
    $region3: #{lin1_forward.1} parent=1 // pred_check_branch
      %12 = sbr.rel (0) target = $region5
    $region4: #{lin1_forward.1} parent=1 // pred_region
      _
    $region5: #{lin1_forward.1} parent=1 // pred_fallthru
      _
    // Predicated region
    $region6: #{lin1_forward.1} parent=1 // pred_check
      _
    $region7: #{lin1_forward.1} parent=1 // pred_check_branch
      %14 = sbr.rel (0) target = $region9
    $region8: #{lin1_forward.1} parent=1 // pred_region
      _
    $region9: #{lin1_forward.1} parent=1 // pred_fallthru
      _
    // Predicated region
    $region10: #{lin1_forward.1} parent=1 // pred_check
      _
    $region11: #{lin1_forward.1} parent=1 // pred_check_branch
      %16 = sbr.rel (0) target = $region13
    $region12: #{lin1_forward.1} parent=1 // pred_region
      %s18 = ssub.s32 16384, 16384
      %19 = vsyncadd [#allocation3], %s18
      %s20 = sshll.u32 [#allocation2], 4
      %s21 = int_to_ptr.vmem [resolvable:$true] %s20
      %26 = dma.hbm_to_vmem [thread:$0]  %s2, 16384, %s21, [#allocation3], 256, 256, 16
    $region13: #{lin1_forward.1} parent=1 // pred_fallthru
      _
    // Predicated region
    $region14: #{lin1_forward.1} parent=1 // pred_check
      _
    $region15: #{lin1_forward.1} parent=1 // pred_check_branch
      %28 = sbr.rel (0) target = $region17
    $region16: #{lin1_forward.1} parent=1 // pred_region
      _
    $region17: #{lin1_forward.1} parent=1 // pred_fallthru
      _
    // Predicated region
    $region18: #{lin1_forward.1} parent=1 // pred_check
      _
    $region19: #{lin1_forward.1} parent=1 // pred_check_branch
      %30 = sbr.rel (0) target = $region21
    $region20: #{lin1_forward.1} parent=1 // pred_region
      _
    $region21: #{lin1_forward.1} parent=1 // pred_fallthru
      _
    // Predicated region
    $region22: #{lin1_forward.1} parent=1 // pred_check
      _
    $region23: #{lin1_forward.1} parent=1 // pred_check_branch
      %32 = sbr.rel (0) target = $region25
    $region24: #{lin1_forward.1} parent=1 // pred_region
      %33 = dma.done [#allocation3], 16384
    $region25: #{lin1_forward.1} parent=1 // pred_fallthru
      _
    %v35 = vld [vmem:[%s0] sm:$0xf]
    %v36 = vld [vmem:[%s0 + $0x4] sm:$0xf]
    %v37 = vld [vmem:[%s0 + $0x8] sm:$0xf]
    %v38 = vld [vmem:[%s0 + $0xc] sm:$0xf]
    %v39 = vld [vmem:[%s0 + $0x10] sm:$0xf]
    %v40 = vld [vmem:[%s0 + $0x14] sm:$0xf]
    %v41 = vld [vmem:[%s0 + $0x18] sm:$0xf]
    %v42 = vld [vmem:[%s0 + $0x1c] sm:$0xf]
    %vm43 = vcmask 125952
    %v44 = vsel %vm43, %v35, inf
    %45 = vmin.xlane.f32.xlu0 %v44
    %v46 = vpop.xlane.xlu0 %45
    %v47 = vsel %vm43, %v36, inf
    %48 = vmin.xlane.f32.xlu0 %v47
    %v49 = vpop.xlane.xlu0 %48
    %v50 = vsel %vm43, %v37, inf
    %51 = vmin.xlane.f32.xlu0 %v50
    %v52 = vpop.xlane.xlu0 %51
    %v53 = vsel %vm43, %v38, inf
    %54 = vmin.xlane.f32.xlu0 %v53
    %v55 = vpop.xlane.xlu0 %54
    %v56 = vsel %vm43, %v39, inf
    %57 = vmin.xlane.f32.xlu0 %v56
    %v58 = vpop.xlane.xlu0 %57
    %v59 = vsel %vm43, %v40, inf
    %60 = vmin.xlane.f32.xlu0 %v59
    %v61 = vpop.xlane.xlu0 %60
    %v62 = vsel %vm43, %v41, inf
    %63 = vmin.xlane.f32.xlu0 %v62
    %v64 = vpop.xlane.xlu0 %63
    %v65 = vsel %vm43, %v42, inf
    %66 = vmin.xlane.f32.xlu0 %v65
    %v67 = vpop.xlane.xlu0 %66
    %v68 = vsel %vm43, %v35, -inf
    %69 = vmax.xlane.f32.xlu0 %v68
    %v70 = vpop.xlane.xlu0 %69
    %v71 = vsel %vm43, %v36, -inf
    %72 = vmax.xlane.f32.xlu0 %v71
    %v73 = vpop.xlane.xlu0 %72
    %v74 = vsel %vm43, %v37, -inf
    %75 = vmax.xlane.f32.xlu0 %v74
    %v76 = vpop.xlane.xlu0 %75
    %v77 = vsel %vm43, %v38, -inf
    %78 = vmax.xlane.f32.xlu0 %v77
    %v79 = vpop.xlane.xlu0 %78
    %v80 = vsel %vm43, %v39, -inf
    %81 = vmax.xlane.f32.xlu0 %v80
    %v82 = vpop.xlane.xlu0 %81
    %v83 = vsel %vm43, %v40, -inf
    %84 = vmax.xlane.f32.xlu0 %v83
    %v85 = vpop.xlane.xlu0 %84
    %v86 = vsel %vm43, %v41, -inf
    %87 = vmax.xlane.f32.xlu0 %v86
    %v88 = vpop.xlane.xlu0 %87
    %v89 = vsel %vm43, %v42, -inf
    %90 = vmax.xlane.f32.xlu0 %v89
    %v91 = vpop.xlane.xlu0 %90
    %v92 = vsel %vm43, %v35, 0.0
    %93 = vadd.xlane.f32.xlu0 %v92
    %v94 = vpop.xlane.xlu0 %93
    %v95 = vsel %vm43, %v36, 0.0
    %96 = vadd.xlane.f32.xlu0 %v95
    %v97 = vpop.xlane.xlu0 %96
    %v98 = vsel %vm43, %v37, 0.0
    %99 = vadd.xlane.f32.xlu0 %v98
    %v100 = vpop.xlane.xlu0 %99
    %v101 = vsel %vm43, %v38, 0.0
    %102 = vadd.xlane.f32.xlu0 %v101
    %v103 = vpop.xlane.xlu0 %102
    %v104 = vsel %vm43, %v39, 0.0
    %105 = vadd.xlane.f32.xlu0 %v104
    %v106 = vpop.xlane.xlu0 %105
    %v107 = vsel %vm43, %v40, 0.0
    %108 = vadd.xlane.f32.xlu0 %v107
    %v109 = vpop.xlane.xlu0 %108
    %v110 = vsel %vm43, %v41, 0.0
    %111 = vadd.xlane.f32.xlu0 %v110
    %v112 = vpop.xlane.xlu0 %111
    %v113 = vsel %vm43, %v42, 0.0
    %114 = vadd.xlane.f32.xlu0 %v113
    %v115 = vpop.xlane.xlu0 %114
    %v116 = vrcp.pop 16.0
    %v117 = vmul.f32 %v94, %v116
    %v118 = vmul.f32 %v97, %v116
    %v119 = vmul.f32 %v100, %v116
    %v120 = vmul.f32 %v103, %v116
    %v121 = vmul.f32 %v106, %v116
    %v122 = vmul.f32 %v109, %v116
    %v123 = vmul.f32 %v112, %v116
    %v124 = vmul.f32 %v115, %v116
    %v125 = vsub.f32 %v35, %v117
    %v126 = vsub.f32 %v36, %v118
    %v127 = vsub.f32 %v37, %v119
    %v128 = vsub.f32 %v38, %v120
    %v129 = vsub.f32 %v39, %v121
    %v130 = vsub.f32 %v40, %v122
    %v131 = vsub.f32 %v41, %v123
    %v132 = vsub.f32 %v42, %v124
    %v133 = vmul.f32 %v125, %v125
    %v134 = vmul.f32 %v126, %v126
    %v135 = vmul.f32 %v127, %v127
    %v136 = vmul.f32 %v128, %v128
    %v137 = vmul.f32 %v129, %v129
    %v138 = vmul.f32 %v130, %v130
    %v139 = vmul.f32 %v131, %v131
    %v140 = vmul.f32 %v132, %v132
    %v141 = vsel %vm43, %v133, 0.0
    %142 = vadd.xlane.f32.xlu0 %v141
    %v143 = vpop.xlane.xlu0 %142
    %v144 = vsel %vm43, %v134, 0.0
    %145 = vadd.xlane.f32.xlu0 %v144
    %v146 = vpop.xlane.xlu0 %145
    %v147 = vsel %vm43, %v135, 0.0
    %148 = vadd.xlane.f32.xlu0 %v147
    %v149 = vpop.xlane.xlu0 %148
    %v150 = vsel %vm43, %v136, 0.0
    %151 = vadd.xlane.f32.xlu0 %v150
    %v152 = vpop.xlane.xlu0 %151
    %v153 = vsel %vm43, %v137, 0.0
    %154 = vadd.xlane.f32.xlu0 %v153
    %v155 = vpop.xlane.xlu0 %154
    %v156 = vsel %vm43, %v138, 0.0
    %157 = vadd.xlane.f32.xlu0 %v156
    %v158 = vpop.xlane.xlu0 %157
    %v159 = vsel %vm43, %v139, 0.0
    %160 = vadd.xlane.f32.xlu0 %v159
    %v161 = vpop.xlane.xlu0 %160
    %v162 = vsel %vm43, %v140, 0.0
    %163 = vadd.xlane.f32.xlu0 %v162
    %v164 = vpop.xlane.xlu0 %163
    %v165 = vrcp.pop 15.0
    %v166 = vmul.f32 %v143, %v165
    %v167 = vmul.f32 %v146, %v165
    %v168 = vmul.f32 %v149, %v165
    %v169 = vmul.f32 %v152, %v165
    %v170 = vmul.f32 %v155, %v165
    %v171 = vmul.f32 %v158, %v165
    %v172 = vmul.f32 %v161, %v165
    %v173 = vmul.f32 %v164, %v165
    %v174 = vrsqrt.pop %v166
    %v175 = vmul.f32 %v166, %v174
    %vm176 = vcmp.eq.f32.partialorder %v166, inf
    %v177 = vsel %vm176, %v166, %v175
    %vm178 = vcmp.eq.f32.partialorder %v166, 0.0
    %v179 = vand.u32 %v166, 2147483648
    %v180 = vsel %vm178, %v179, %v177
    %v181 = vrsqrt.pop %v167
    %v182 = vmul.f32 %v167, %v181
    %vm183 = vcmp.eq.f32.partialorder %v167, inf
    %v184 = vsel %vm183, %v167, %v182
    %vm185 = vcmp.eq.f32.partialorder %v167, 0.0
    %v186 = vand.u32 %v167, 2147483648
    %v187 = vsel %vm185, %v186, %v184
    %v188 = vrsqrt.pop %v168
    %v189 = vmul.f32 %v168, %v188
    %vm190 = vcmp.eq.f32.partialorder %v168, inf
    %v191 = vsel %vm190, %v168, %v189
    %vm192 = vcmp.eq.f32.partialorder %v168, 0.0
    %v193 = vand.u32 %v168, 2147483648
    %v194 = vsel %vm192, %v193, %v191
    %v195 = vrsqrt.pop %v169
    %v196 = vmul.f32 %v169, %v195
    %vm197 = vcmp.eq.f32.partialorder %v169, inf
    %v198 = vsel %vm197, %v169, %v196
    %vm199 = vcmp.eq.f32.partialorder %v169, 0.0
    %v200 = vand.u32 %v169, 2147483648
    %v201 = vsel %vm199, %v200, %v198
    %v202 = vrsqrt.pop %v170
    %v203 = vmul.f32 %v170, %v202
    %vm204 = vcmp.eq.f32.partialorder %v170, inf
    %v205 = vsel %vm204, %v170, %v203
    %vm206 = vcmp.eq.f32.partialorder %v170, 0.0
    %v207 = vand.u32 %v170, 2147483648
    %v208 = vsel %vm206, %v207, %v205
    %v209 = vrsqrt.pop %v171
    %v210 = vmul.f32 %v171, %v209
    %vm211 = vcmp.eq.f32.partialorder %v171, inf
    %v212 = vsel %vm211, %v171, %v210
    %vm213 = vcmp.eq.f32.partialorder %v171, 0.0
    %v214 = vand.u32 %v171, 2147483648
    %v215 = vsel %vm213, %v214, %v212
    %v216 = vrsqrt.pop %v172
    %v217 = vmul.f32 %v172, %v216
    %vm218 = vcmp.eq.f32.partialorder %v172, inf
    %v219 = vsel %vm218, %v172, %v217
    %vm220 = vcmp.eq.f32.partialorder %v172, 0.0
    %v221 = vand.u32 %v172, 2147483648
    %v222 = vsel %vm220, %v221, %v219
    %v223 = vrsqrt.pop %v173
    %v224 = vmul.f32 %v173, %v223
    %vm225 = vcmp.eq.f32.partialorder %v173, inf
    %v226 = vsel %vm225, %v173, %v224
    %vm227 = vcmp.eq.f32.partialorder %v173, 0.0
    %v228 = vand.u32 %v173, 2147483648
    %v229 = vsel %vm227, %v228, %v226
    %v230 = vpack.c.bf16 %v46, %v46
    %v231 = vpack.c.bf16 %v49, %v49
    %v232 = vpack.c.bf16 %v52, %v52
    %v233 = vpack.c.bf16 %v55, %v55
    %v234 = vpack.c.bf16 %v58, %v58
    %v235 = vpack.c.bf16 %v61, %v61
    %v236 = vpack.c.bf16 %v64, %v64
    %v237 = vpack.c.bf16 %v67, %v67
    %v238 = vld [vmem:[%s1] sm:$0x33]
    %v239 = vld [vmem:[%s1 + $0x8] sm:$0x33]
    %v240 = vpack.c.bf16 %v70, %v70
    %v241 = vpack.c.bf16 %v73, %v73
    %v242 = vpack.c.bf16 %v76, %v76
    %v243 = vpack.c.bf16 %v79, %v79
    %v244 = vpack.c.bf16 %v82, %v82
    %v245 = vpack.c.bf16 %v85, %v85
    %v246 = vpack.c.bf16 %v88, %v88
    %v247 = vpack.c.bf16 %v91, %v91
    %v248 = vld [vmem:[%s1] sm:$0xcc]
    %v249 = vld [vmem:[%s1 + $0x8] sm:$0xcc]
    %v258 = vunpack.c.l.b16 %v240
    %v259 = vunpack.c.l.b16 %v241
    %v260 = vunpack.c.l.b16 %v242
    %v261 = vunpack.c.l.b16 %v243
    %v262 = vunpack.c.l.b16 %v244
    %v263 = vunpack.c.l.b16 %v245
    %v264 = vunpack.c.l.b16 %v246
    %v265 = vunpack.c.l.b16 %v247
    %v266 = vlaneseq
    %v267 = vand.u32 %v266, 127
    %v268 = vlaneseq
    %v269 = vshrl.u32 %v268, 7
    %v270 = vsub.s32 %v267, %v269
    %v271 = vrot.slane %v258, %v270
    %v272 = vlaneseq
    %v273 = vshrl.u32 %v272, 7
    %v274 = vsub.s32 %v267, %v273
    %v275 = vrot.slane %v259, %v274
    %v276 = vlaneseq
    %v277 = vshrl.u32 %v276, 7
    %v278 = vsub.s32 %v267, %v277
    %v279 = vrot.slane %v260, %v278
    %v280 = vlaneseq
    %v281 = vshrl.u32 %v280, 7
    %v282 = vsub.s32 %v267, %v281
    %v283 = vrot.slane %v261, %v282
    %v284 = vlaneseq
    %v285 = vshrl.u32 %v284, 7
    %v286 = vsub.s32 %v267, %v285
    %v287 = vrot.slane %v262, %v286
    %v288 = vlaneseq
    %v289 = vshrl.u32 %v288, 7
    %v290 = vsub.s32 %v267, %v289
    %v291 = vrot.slane %v263, %v290
    %v292 = vlaneseq
    %v293 = vshrl.u32 %v292, 7
    %v294 = vsub.s32 %v267, %v293
    %v295 = vrot.slane %v264, %v294
    %v296 = vlaneseq
    %v297 = vshrl.u32 %v296, 7
    %v298 = vsub.s32 %v267, %v297
    %v299 = vrot.slane %v265, %v298
    %vm300 = vcmask 1041409
    %v301 = vsel %vm300, %v275, %v271
    %vm302 = vcmask 1042434
    %v303 = vsel %vm302, %v279, %v301
    %vm304 = vcmask 1043459
    %v305 = vsel %vm304, %v283, %v303
    %vm306 = vcmask 1044484
    %v307 = vsel %vm306, %v287, %v305
    %vm308 = vcmask 1045509
    %v309 = vsel %vm308, %v291, %v307
    %vm310 = vcmask 1046534
    %v311 = vsel %vm310, %v295, %v309
    %vm312 = vcmask 1047559
    %v313 = vsel %vm312, %v299, %v311
    %v314 = vpack.c.b16 %v313, %v313
    %v317 = vunpack.c.l.b16 %v248
    %v318 = vunpack.c.h.b16 %v248
    %v319 = vunpack.c.l.b16 %v249
    %v320 = vunpack.c.h.b16 %v249
    %v321 = vpack.c.b16 %v317, %v317
    %v322 = vpack.c.b16 %v318, %v318
    %v323 = vpack.c.b16 %v319, %v319
    %v324 = vpack.c.b16 %v320, %v320
    %v325 = vrot.slane %v321, 2
    %v326 = vrot.slane %v322, 2
    %v327 = vrot.slane %v323, 2
    %v328 = vrot.slane %v324, 2
    %vm329 = vcmask 31744
    %v331 = vsel %vm329, %v314, 0
    %vm333 = vcmask 1041408
    %v335 = vsel %vm333, %v325, 0
    %v338 = vsel %vm333, %v326, 0
    %v341 = vsel %vm333, %v327, 0
    %v344 = vsel %vm333, %v328, 0
    %346 = vmatprep.subr.bf16.mxu0 0
    %347 = vmatpush1.bf16.msra.mxu0 0
    %348 = vmatprep.subr.bf16.mxu0 0
    %349 = vmatpush1.bf16.msra.mxu0 0
    %350 = vmatprep.subr.bf16.mxu0 0
    %351 = vmatpush1.bf16.msra.mxu0 0
    %352 = vmatprep.subr.bf16.mxu0 0
    %353 = vmatpush1.bf16.msra.mxu0 0
    %354 = vmatprep.subr.bf16.mxu0 0
    %355 = vmatpush1.bf16.msra.mxu0 0
    %356 = vmatprep.subr.bf16.mxu0 0
    %357 = vmatpush1.bf16.msra.mxu0 0
    %358 = vmatprep.subr.bf16.mxu0 0
    %359 = vmatpush1.bf16.msra.mxu0 0
    %360 = vmatprep.subr.bf16.mxu0 %v338
    %361 = vmatpush1.bf16.msra.mxu0 %v335
    %362 = vmatprep.subr.bf16.mxu0 0
    %363 = vmatpush2.bf16.msra.mxu0 0
    %364 = vmatprep.subr.bf16.mxu0 0
    %365 = vmatpush2.bf16.msra.mxu0 0
    %366 = vmatprep.subr.bf16.mxu0 0
    %367 = vmatpush2.bf16.msra.mxu0 0
    %368 = vmatprep.subr.bf16.mxu0 0
    %369 = vmatpush2.bf16.msra.mxu0 0
    %370 = vmatprep.subr.bf16.mxu0 0
    %371 = vmatpush2.bf16.msra.mxu0 0
    %372 = vmatprep.subr.bf16.mxu0 0
    %373 = vmatpush2.bf16.msra.mxu0 0
    %374 = vmatprep.subr.bf16.mxu0 0
    %375 = vmatpush2.bf16.msra.mxu0 0
    %376 = vmatprep.subr.bf16.mxu0 0
    %377 = vmatpush2.bf16.msra.mxu0 0
    %378 = vmatprep.mubr.bf16.mxu0 0
    %379 = vmatmul.mubr.bf16.gmra.mxu0 %v331
    %v380 = vpop.f32.mrf.mxu0
    %v381 = vadd.f32 0.0, %v380
    %v382 = vpop.f32.mrf.mxu0
    %v383 = vadd.f32 0.0, %v382
    %v384 = vpop.f32.mrf.mxu0
    %v385 = vpop.f32.mrf.mxu0
    %386 = vdwg.mxu0
    %387 = vmatprep.subr.bf16.mxu0 0
    %388 = vmatpush1.bf16.msra.mxu0 0
    %389 = vmatprep.subr.bf16.mxu0 0
    %390 = vmatpush1.bf16.msra.mxu0 0
    %391 = vmatprep.subr.bf16.mxu0 0
    %392 = vmatpush1.bf16.msra.mxu0 0
    %393 = vmatprep.subr.bf16.mxu0 0
    %394 = vmatpush1.bf16.msra.mxu0 0
    %395 = vmatprep.subr.bf16.mxu0 0
    %396 = vmatpush1.bf16.msra.mxu0 0
    %397 = vmatprep.subr.bf16.mxu0 0
    %398 = vmatpush1.bf16.msra.mxu0 0
    %399 = vmatprep.subr.bf16.mxu0 0
    %400 = vmatpush1.bf16.msra.mxu0 0
    %401 = vmatprep.subr.bf16.mxu0 %v344
    %402 = vmatpush1.bf16.msra.mxu0 %v341
    %403 = vmatprep.subr.bf16.mxu0 0
    %404 = vmatpush2.bf16.msra.mxu0 0
    %405 = vmatprep.subr.bf16.mxu0 0
    %406 = vmatpush2.bf16.msra.mxu0 0
    %407 = vmatprep.subr.bf16.mxu0 0
    %408 = vmatpush2.bf16.msra.mxu0 0
    %409 = vmatprep.subr.bf16.mxu0 0
    %410 = vmatpush2.bf16.msra.mxu0 0
    %411 = vmatprep.subr.bf16.mxu0 0
    %412 = vmatpush2.bf16.msra.mxu0 0
    %413 = vmatprep.subr.bf16.mxu0 0
    %414 = vmatpush2.bf16.msra.mxu0 0
    %415 = vmatprep.subr.bf16.mxu0 0
    %416 = vmatpush2.bf16.msra.mxu0 0
    %417 = vmatprep.subr.bf16.mxu0 0
    %418 = vmatpush2.bf16.msra.mxu0 0
    %419 = vmatprep.mubr.bf16.mxu0 0
    %420 = vmatmul.mubr.bf16.gmra.mxu0 %v331
    %v421 = vpop.f32.mrf.mxu0
    %v422 = vadd.f32 0.0, %v421
    %v423 = vpop.f32.mrf.mxu0
    %v424 = vadd.f32 0.0, %v423
    %v425 = vpop.f32.mrf.mxu0
    %v426 = vpop.f32.mrf.mxu0
    %427 = vdwg.mxu0
    %v436 = vunpack.c.l.b16 %v230
    %v437 = vunpack.c.l.b16 %v231
    %v438 = vunpack.c.l.b16 %v232
    %v439 = vunpack.c.l.b16 %v233
    %v440 = vunpack.c.l.b16 %v234
    %v441 = vunpack.c.l.b16 %v235
    %v442 = vunpack.c.l.b16 %v236
    %v443 = vunpack.c.l.b16 %v237
    %v444 = vlaneseq
    %v445 = vshrl.u32 %v444, 7
    %v446 = vsub.s32 %v267, %v445
    %v447 = vrot.slane %v436, %v446
    %v448 = vlaneseq
    %v449 = vshrl.u32 %v448, 7
    %v450 = vsub.s32 %v267, %v449
    %v451 = vrot.slane %v437, %v450
    %v452 = vlaneseq
    %v453 = vshrl.u32 %v452, 7
    %v454 = vsub.s32 %v267, %v453
    %v455 = vrot.slane %v438, %v454
    %v456 = vlaneseq
    %v457 = vshrl.u32 %v456, 7
    %v458 = vsub.s32 %v267, %v457
    %v459 = vrot.slane %v439, %v458
    %v460 = vlaneseq
    %v461 = vshrl.u32 %v460, 7
    %v462 = vsub.s32 %v267, %v461
    %v463 = vrot.slane %v440, %v462
    %v464 = vlaneseq
    %v465 = vshrl.u32 %v464, 7
    %v466 = vsub.s32 %v267, %v465
    %v467 = vrot.slane %v441, %v466
    %v468 = vlaneseq
    %v469 = vshrl.u32 %v468, 7
    %v470 = vsub.s32 %v267, %v469
    %v471 = vrot.slane %v442, %v470
    %v472 = vlaneseq
    %v473 = vshrl.u32 %v472, 7
    %v474 = vsub.s32 %v267, %v473
    %v475 = vrot.slane %v443, %v474
    %v476 = vsel %vm300, %v451, %v447
    %v477 = vsel %vm302, %v455, %v476
    %v478 = vsel %vm304, %v459, %v477
    %v479 = vsel %vm306, %v463, %v478
    %v480 = vsel %vm308, %v467, %v479
    %v481 = vsel %vm310, %v471, %v480
    %v482 = vsel %vm312, %v475, %v481
    %v483 = vpack.c.b16 %v482, %v482
    %v486 = vunpack.c.l.b16 %v238
    %v487 = vunpack.c.h.b16 %v238
    %v488 = vunpack.c.l.b16 %v239
    %v489 = vunpack.c.h.b16 %v239
    %v490 = vpack.c.b16 %v486, %v486
    %v491 = vpack.c.b16 %v487, %v487
    %v492 = vpack.c.b16 %v488, %v488
    %v493 = vpack.c.b16 %v489, %v489
    %v495 = vsel %vm329, %v483, 0
    %v498 = vsel %vm333, %v490, 0
    %v501 = vsel %vm333, %v491, 0
    %v504 = vsel %vm333, %v492, 0
    %v507 = vsel %vm333, %v493, 0
    %509 = vmatprep.subr.bf16.mxu0 0
    %510 = vmatpush1.bf16.msra.mxu0 0
    %511 = vmatprep.subr.bf16.mxu0 0
    %512 = vmatpush1.bf16.msra.mxu0 0
    %513 = vmatprep.subr.bf16.mxu0 0
    %514 = vmatpush1.bf16.msra.mxu0 0
    %515 = vmatprep.subr.bf16.mxu0 0
    %516 = vmatpush1.bf16.msra.mxu0 0
    %517 = vmatprep.subr.bf16.mxu0 0
    %518 = vmatpush1.bf16.msra.mxu0 0
    %519 = vmatprep.subr.bf16.mxu0 0
    %520 = vmatpush1.bf16.msra.mxu0 0
    %521 = vmatprep.subr.bf16.mxu0 0
    %522 = vmatpush1.bf16.msra.mxu0 0
    %523 = vmatprep.subr.bf16.mxu0 %v501
    %524 = vmatpush1.bf16.msra.mxu0 %v498
    %525 = vmatprep.subr.bf16.mxu0 0
    %526 = vmatpush2.bf16.msra.mxu0 0
    %527 = vmatprep.subr.bf16.mxu0 0
    %528 = vmatpush2.bf16.msra.mxu0 0
    %529 = vmatprep.subr.bf16.mxu0 0
    %530 = vmatpush2.bf16.msra.mxu0 0
    %531 = vmatprep.subr.bf16.mxu0 0
    %532 = vmatpush2.bf16.msra.mxu0 0
    %533 = vmatprep.subr.bf16.mxu0 0
    %534 = vmatpush2.bf16.msra.mxu0 0
    %535 = vmatprep.subr.bf16.mxu0 0
    %536 = vmatpush2.bf16.msra.mxu0 0
    %537 = vmatprep.subr.bf16.mxu0 0
    %538 = vmatpush2.bf16.msra.mxu0 0
    %539 = vmatprep.subr.bf16.mxu0 0
    %540 = vmatpush2.bf16.msra.mxu0 0
    %541 = vmatprep.mubr.bf16.mxu0 0
    %542 = vmatmul.mubr.bf16.gmra.mxu0 %v495
    %v543 = vpop.f32.mrf.mxu0
    %v544 = vadd.f32 %v381, %v543
    %v545 = vpop.f32.mrf.mxu0
    %v546 = vadd.f32 %v383, %v545
    %v547 = vpop.f32.mrf.mxu0
    %v548 = vpop.f32.mrf.mxu0
    %549 = vdwg.mxu0
    %550 = vmatprep.subr.bf16.mxu0 0
    %551 = vmatpush1.bf16.msra.mxu0 0
    %552 = vmatprep.subr.bf16.mxu0 0
    %553 = vmatpush1.bf16.msra.mxu0 0
    %554 = vmatprep.subr.bf16.mxu0 0
    %555 = vmatpush1.bf16.msra.mxu0 0
    %556 = vmatprep.subr.bf16.mxu0 0
    %557 = vmatpush1.bf16.msra.mxu0 0
    %558 = vmatprep.subr.bf16.mxu0 0
    %559 = vmatpush1.bf16.msra.mxu0 0
    %560 = vmatprep.subr.bf16.mxu0 0
    %561 = vmatpush1.bf16.msra.mxu0 0
    %562 = vmatprep.subr.bf16.mxu0 0
    %563 = vmatpush1.bf16.msra.mxu0 0
    %564 = vmatprep.subr.bf16.mxu0 %v507
    %565 = vmatpush1.bf16.msra.mxu0 %v504
    %566 = vmatprep.subr.bf16.mxu0 0
    %567 = vmatpush2.bf16.msra.mxu0 0
    %568 = vmatprep.subr.bf16.mxu0 0
    %569 = vmatpush2.bf16.msra.mxu0 0
    %570 = vmatprep.subr.bf16.mxu0 0
    %571 = vmatpush2.bf16.msra.mxu0 0
    %572 = vmatprep.subr.bf16.mxu0 0
    %573 = vmatpush2.bf16.msra.mxu0 0
    %574 = vmatprep.subr.bf16.mxu0 0
    %575 = vmatpush2.bf16.msra.mxu0 0
    %576 = vmatprep.subr.bf16.mxu0 0
    %577 = vmatpush2.bf16.msra.mxu0 0
    %578 = vmatprep.subr.bf16.mxu0 0
    %579 = vmatpush2.bf16.msra.mxu0 0
    %580 = vmatprep.subr.bf16.mxu0 0
    %581 = vmatpush2.bf16.msra.mxu0 0
    %582 = vmatprep.mubr.bf16.mxu0 0
    %583 = vmatmul.mubr.bf16.gmra.mxu0 %v495
    %v584 = vpop.f32.mrf.mxu0
    %v585 = vadd.f32 %v422, %v584
    %v586 = vpop.f32.mrf.mxu0
    %v587 = vadd.f32 %v424, %v586
    %v588 = vpop.f32.mrf.mxu0
    %v589 = vpop.f32.mrf.mxu0
    %590 = vdwg.mxu0
    %v591 = vpack.c.bf16 %v117, %v117
    %v592 = vpack.c.bf16 %v118, %v118
    %v593 = vpack.c.bf16 %v119, %v119
    %v594 = vpack.c.bf16 %v120, %v120
    %v595 = vpack.c.bf16 %v121, %v121
    %v596 = vpack.c.bf16 %v122, %v122
    %v597 = vpack.c.bf16 %v123, %v123
    %v598 = vpack.c.bf16 %v124, %v124
    %v599 = vld [vmem:[%s1 + $0x10] sm:$0x33]
    %v600 = vld [vmem:[%s1 + $0x18] sm:$0x33]
    %v609 = vunpack.c.l.b16 %v591
    %v610 = vunpack.c.l.b16 %v592
    %v611 = vunpack.c.l.b16 %v593
    %v612 = vunpack.c.l.b16 %v594
    %v613 = vunpack.c.l.b16 %v595
    %v614 = vunpack.c.l.b16 %v596
    %v615 = vunpack.c.l.b16 %v597
    %v616 = vunpack.c.l.b16 %v598
    %v617 = vlaneseq
    %v618 = vshrl.u32 %v617, 7
    %v619 = vsub.s32 %v267, %v618
    %v620 = vrot.slane %v609, %v619
    %v621 = vlaneseq
    %v622 = vshrl.u32 %v621, 7
    %v623 = vsub.s32 %v267, %v622
    %v624 = vrot.slane %v610, %v623
    %v625 = vlaneseq
    %v626 = vshrl.u32 %v625, 7
    %v627 = vsub.s32 %v267, %v626
    %v628 = vrot.slane %v611, %v627
    %v629 = vlaneseq
    %v630 = vshrl.u32 %v629, 7
    %v631 = vsub.s32 %v267, %v630
    %v632 = vrot.slane %v612, %v631
    %v633 = vlaneseq
    %v634 = vshrl.u32 %v633, 7
    %v635 = vsub.s32 %v267, %v634
    %v636 = vrot.slane %v613, %v635
    %v637 = vlaneseq
    %v638 = vshrl.u32 %v637, 7
    %v639 = vsub.s32 %v267, %v638
    %v640 = vrot.slane %v614, %v639
    %v641 = vlaneseq
    %v642 = vshrl.u32 %v641, 7
    %v643 = vsub.s32 %v267, %v642
    %v644 = vrot.slane %v615, %v643
    %v645 = vlaneseq
    %v646 = vshrl.u32 %v645, 7
    %v647 = vsub.s32 %v267, %v646
    %v648 = vrot.slane %v616, %v647
    %v649 = vsel %vm300, %v624, %v620
    %v650 = vsel %vm302, %v628, %v649
    %v651 = vsel %vm304, %v632, %v650
    %v652 = vsel %vm306, %v636, %v651
    %v653 = vsel %vm308, %v640, %v652
    %v654 = vsel %vm310, %v644, %v653
    %v655 = vsel %vm312, %v648, %v654
    %v656 = vpack.c.b16 %v655, %v655
    %v659 = vunpack.c.l.b16 %v599
    %v660 = vunpack.c.h.b16 %v599
    %v661 = vunpack.c.l.b16 %v600
    %v662 = vunpack.c.h.b16 %v600
    %v663 = vpack.c.b16 %v659, %v659
    %v664 = vpack.c.b16 %v660, %v660
    %v665 = vpack.c.b16 %v661, %v661
    %v666 = vpack.c.b16 %v662, %v662
    %v668 = vsel %vm329, %v656, 0
    %v671 = vsel %vm333, %v663, 0
    %v674 = vsel %vm333, %v664, 0
    %v677 = vsel %vm333, %v665, 0
    %v680 = vsel %vm333, %v666, 0
    %682 = vmatprep.subr.bf16.mxu0 0
    %683 = vmatpush1.bf16.msra.mxu0 0
    %684 = vmatprep.subr.bf16.mxu0 0
    %685 = vmatpush1.bf16.msra.mxu0 0
    %686 = vmatprep.subr.bf16.mxu0 0
    %687 = vmatpush1.bf16.msra.mxu0 0
    %688 = vmatprep.subr.bf16.mxu0 0
    %689 = vmatpush1.bf16.msra.mxu0 0
    %690 = vmatprep.subr.bf16.mxu0 0
    %691 = vmatpush1.bf16.msra.mxu0 0
    %692 = vmatprep.subr.bf16.mxu0 0
    %693 = vmatpush1.bf16.msra.mxu0 0
    %694 = vmatprep.subr.bf16.mxu0 0
    %695 = vmatpush1.bf16.msra.mxu0 0
    %696 = vmatprep.subr.bf16.mxu0 %v674
    %697 = vmatpush1.bf16.msra.mxu0 %v671
    %698 = vmatprep.subr.bf16.mxu0 0
    %699 = vmatpush2.bf16.msra.mxu0 0
    %700 = vmatprep.subr.bf16.mxu0 0
    %701 = vmatpush2.bf16.msra.mxu0 0
    %702 = vmatprep.subr.bf16.mxu0 0
    %703 = vmatpush2.bf16.msra.mxu0 0
    %704 = vmatprep.subr.bf16.mxu0 0
    %705 = vmatpush2.bf16.msra.mxu0 0
    %706 = vmatprep.subr.bf16.mxu0 0
    %707 = vmatpush2.bf16.msra.mxu0 0
    %708 = vmatprep.subr.bf16.mxu0 0
    %709 = vmatpush2.bf16.msra.mxu0 0
    %710 = vmatprep.subr.bf16.mxu0 0
    %711 = vmatpush2.bf16.msra.mxu0 0
    %712 = vmatprep.subr.bf16.mxu0 0
    %713 = vmatpush2.bf16.msra.mxu0 0
    %714 = vmatprep.mubr.bf16.mxu0 0
    %715 = vmatmul.mubr.bf16.gmra.mxu0 %v668
    %v716 = vpop.f32.mrf.mxu0
    %v717 = vadd.f32 0.0, %v716
    %v718 = vpop.f32.mrf.mxu0
    %v719 = vadd.f32 0.0, %v718
    %v720 = vpop.f32.mrf.mxu0
    %v721 = vpop.f32.mrf.mxu0
    %722 = vdwg.mxu0
    %723 = vmatprep.subr.bf16.mxu0 0
    %724 = vmatpush1.bf16.msra.mxu0 0
    %725 = vmatprep.subr.bf16.mxu0 0
    %726 = vmatpush1.bf16.msra.mxu0 0
    %727 = vmatprep.subr.bf16.mxu0 0
    %728 = vmatpush1.bf16.msra.mxu0 0
    %729 = vmatprep.subr.bf16.mxu0 0
    %730 = vmatpush1.bf16.msra.mxu0 0
    %731 = vmatprep.subr.bf16.mxu0 0
    %732 = vmatpush1.bf16.msra.mxu0 0
    %733 = vmatprep.subr.bf16.mxu0 0
    %734 = vmatpush1.bf16.msra.mxu0 0
    %735 = vmatprep.subr.bf16.mxu0 0
    %736 = vmatpush1.bf16.msra.mxu0 0
    %737 = vmatprep.subr.bf16.mxu0 %v680
    %738 = vmatpush1.bf16.msra.mxu0 %v677
    %739 = vmatprep.subr.bf16.mxu0 0
    %740 = vmatpush2.bf16.msra.mxu0 0
    %741 = vmatprep.subr.bf16.mxu0 0
    %742 = vmatpush2.bf16.msra.mxu0 0
    %743 = vmatprep.subr.bf16.mxu0 0
    %744 = vmatpush2.bf16.msra.mxu0 0
    %745 = vmatprep.subr.bf16.mxu0 0
    %746 = vmatpush2.bf16.msra.mxu0 0
    %747 = vmatprep.subr.bf16.mxu0 0
    %748 = vmatpush2.bf16.msra.mxu0 0
    %749 = vmatprep.subr.bf16.mxu0 0
    %750 = vmatpush2.bf16.msra.mxu0 0
    %751 = vmatprep.subr.bf16.mxu0 0
    %752 = vmatpush2.bf16.msra.mxu0 0
    %753 = vmatprep.subr.bf16.mxu0 0
    %754 = vmatpush2.bf16.msra.mxu0 0
    %755 = vmatprep.mubr.bf16.mxu0 0
    %756 = vmatmul.mubr.bf16.gmra.mxu0 %v668
    %v757 = vpop.f32.mrf.mxu0
    %v758 = vadd.f32 0.0, %v757
    %v759 = vpop.f32.mrf.mxu0
    %v760 = vadd.f32 0.0, %v759
    %v761 = vpop.f32.mrf.mxu0
    %v762 = vpop.f32.mrf.mxu0
    %763 = vdwg.mxu0
    %v764 = vadd.f32 %v544, %v717
    %v765 = vadd.f32 %v546, %v719
    %v766 = vadd.f32 %v585, %v758
    %v767 = vadd.f32 %v587, %v760
    %v768 = vpack.c.bf16 %v180, %v180
    %v769 = vpack.c.bf16 %v187, %v187
    %v770 = vpack.c.bf16 %v194, %v194
    %v771 = vpack.c.bf16 %v201, %v201
    %v772 = vpack.c.bf16 %v208, %v208
    %v773 = vpack.c.bf16 %v215, %v215
    %v774 = vpack.c.bf16 %v222, %v222
    %v775 = vpack.c.bf16 %v229, %v229
    %v776 = vld [vmem:[%s1 + $0x10] sm:$0xcc]
    %v777 = vld [vmem:[%s1 + $0x18] sm:$0xcc]
    %v786 = vunpack.c.l.b16 %v768
    %v787 = vunpack.c.l.b16 %v769
    %v788 = vunpack.c.l.b16 %v770
    %v789 = vunpack.c.l.b16 %v771
    %v790 = vunpack.c.l.b16 %v772
    %v791 = vunpack.c.l.b16 %v773
    %v792 = vunpack.c.l.b16 %v774
    %v793 = vunpack.c.l.b16 %v775
    %v794 = vlaneseq
    %v795 = vshrl.u32 %v794, 7
    %v796 = vsub.s32 %v267, %v795
    %v797 = vrot.slane %v786, %v796
    %v798 = vlaneseq
    %v799 = vshrl.u32 %v798, 7
    %v800 = vsub.s32 %v267, %v799
    %v801 = vrot.slane %v787, %v800
    %v802 = vlaneseq
    %v803 = vshrl.u32 %v802, 7
    %v804 = vsub.s32 %v267, %v803
    %v805 = vrot.slane %v788, %v804
    %v806 = vlaneseq
    %v807 = vshrl.u32 %v806, 7
    %v808 = vsub.s32 %v267, %v807
    %v809 = vrot.slane %v789, %v808
    %v810 = vlaneseq
    %v811 = vshrl.u32 %v810, 7
    %v812 = vsub.s32 %v267, %v811
    %v813 = vrot.slane %v790, %v812
    %v814 = vlaneseq
    %v815 = vshrl.u32 %v814, 7
    %v816 = vsub.s32 %v267, %v815
    %v817 = vrot.slane %v791, %v816
    %v818 = vlaneseq
    %v819 = vshrl.u32 %v818, 7
    %v820 = vsub.s32 %v267, %v819
    %v821 = vrot.slane %v792, %v820
    %v822 = vlaneseq
    %v823 = vshrl.u32 %v822, 7
    %v824 = vsub.s32 %v267, %v823
    %v825 = vrot.slane %v793, %v824
    %v826 = vsel %vm300, %v801, %v797
    %v827 = vsel %vm302, %v805, %v826
    %v828 = vsel %vm304, %v809, %v827
    %v829 = vsel %vm306, %v813, %v828
    %v830 = vsel %vm308, %v817, %v829
    %v831 = vsel %vm310, %v821, %v830
    %v832 = vsel %vm312, %v825, %v831
    %v833 = vpack.c.b16 %v832, %v832
    %v836 = vunpack.c.l.b16 %v776
    %v837 = vunpack.c.h.b16 %v776
    %v838 = vunpack.c.l.b16 %v777
    %v839 = vunpack.c.h.b16 %v777
    %v840 = vpack.c.b16 %v836, %v836
    %v841 = vpack.c.b16 %v837, %v837
    %v842 = vpack.c.b16 %v838, %v838
    %v843 = vpack.c.b16 %v839, %v839
    %v844 = vrot.slane %v840, 2
    %v845 = vrot.slane %v841, 2
    %v846 = vrot.slane %v842, 2
    %v847 = vrot.slane %v843, 2
    %v849 = vsel %vm329, %v833, 0
    %v852 = vsel %vm333, %v844, 0
    %v855 = vsel %vm333, %v845, 0
    %v858 = vsel %vm333, %v846, 0
    %v861 = vsel %vm333, %v847, 0
    %863 = vmatprep.subr.bf16.mxu0 0
    %864 = vmatpush1.bf16.msra.mxu0 0
    %865 = vmatprep.subr.bf16.mxu0 0
    %866 = vmatpush1.bf16.msra.mxu0 0
    %867 = vmatprep.subr.bf16.mxu0 0
    %868 = vmatpush1.bf16.msra.mxu0 0
    %869 = vmatprep.subr.bf16.mxu0 0
    %870 = vmatpush1.bf16.msra.mxu0 0
    %871 = vmatprep.subr.bf16.mxu0 0
    %872 = vmatpush1.bf16.msra.mxu0 0
    %873 = vmatprep.subr.bf16.mxu0 0
    %874 = vmatpush1.bf16.msra.mxu0 0
    %875 = vmatprep.subr.bf16.mxu0 0
    %876 = vmatpush1.bf16.msra.mxu0 0
    %877 = vmatprep.subr.bf16.mxu0 %v855
    %878 = vmatpush1.bf16.msra.mxu0 %v852
    %879 = vmatprep.subr.bf16.mxu0 0
    %880 = vmatpush2.bf16.msra.mxu0 0
    %881 = vmatprep.subr.bf16.mxu0 0
    %882 = vmatpush2.bf16.msra.mxu0 0
    %883 = vmatprep.subr.bf16.mxu0 0
    %884 = vmatpush2.bf16.msra.mxu0 0
    %885 = vmatprep.subr.bf16.mxu0 0
    %886 = vmatpush2.bf16.msra.mxu0 0
    %887 = vmatprep.subr.bf16.mxu0 0
    %888 = vmatpush2.bf16.msra.mxu0 0
    %889 = vmatprep.subr.bf16.mxu0 0
    %890 = vmatpush2.bf16.msra.mxu0 0
    %891 = vmatprep.subr.bf16.mxu0 0
    %892 = vmatpush2.bf16.msra.mxu0 0
    %893 = vmatprep.subr.bf16.mxu0 0
    %894 = vmatpush2.bf16.msra.mxu0 0
    %895 = vmatprep.mubr.bf16.mxu0 0
    %896 = vmatmul.mubr.bf16.gmra.mxu0 %v849
    %v897 = vpop.f32.mrf.mxu0
    %v898 = vadd.f32 0.0, %v897
    %v899 = vpop.f32.mrf.mxu0
    %v900 = vadd.f32 0.0, %v899
    %v901 = vpop.f32.mrf.mxu0
    %v902 = vpop.f32.mrf.mxu0
    %903 = vdwg.mxu0
    %904 = vmatprep.subr.bf16.mxu0 0
    %905 = vmatpush1.bf16.msra.mxu0 0
    %906 = vmatprep.subr.bf16.mxu0 0
    %907 = vmatpush1.bf16.msra.mxu0 0
    %908 = vmatprep.subr.bf16.mxu0 0
    %909 = vmatpush1.bf16.msra.mxu0 0
    %910 = vmatprep.subr.bf16.mxu0 0
    %911 = vmatpush1.bf16.msra.mxu0 0
    %912 = vmatprep.subr.bf16.mxu0 0
    %913 = vmatpush1.bf16.msra.mxu0 0
    %914 = vmatprep.subr.bf16.mxu0 0
    %915 = vmatpush1.bf16.msra.mxu0 0
    %916 = vmatprep.subr.bf16.mxu0 0
    %917 = vmatpush1.bf16.msra.mxu0 0
    %918 = vmatprep.subr.bf16.mxu0 %v861
    %919 = vmatpush1.bf16.msra.mxu0 %v858
    %920 = vmatprep.subr.bf16.mxu0 0
    %921 = vmatpush2.bf16.msra.mxu0 0
    %922 = vmatprep.subr.bf16.mxu0 0
    %923 = vmatpush2.bf16.msra.mxu0 0
    %924 = vmatprep.subr.bf16.mxu0 0
    %925 = vmatpush2.bf16.msra.mxu0 0
    %926 = vmatprep.subr.bf16.mxu0 0
    %927 = vmatpush2.bf16.msra.mxu0 0
    %928 = vmatprep.subr.bf16.mxu0 0
    %929 = vmatpush2.bf16.msra.mxu0 0
    %930 = vmatprep.subr.bf16.mxu0 0
    %931 = vmatpush2.bf16.msra.mxu0 0
    %932 = vmatprep.subr.bf16.mxu0 0
    %933 = vmatpush2.bf16.msra.mxu0 0
    %934 = vmatprep.subr.bf16.mxu0 0
    %935 = vmatpush2.bf16.msra.mxu0 0
    %936 = vmatprep.mubr.bf16.mxu0 0
    %937 = vmatmul.mubr.bf16.gmra.mxu0 %v849
    %v938 = vpop.f32.mrf.mxu0
    %v939 = vadd.f32 0.0, %v938
    %v940 = vpop.f32.mrf.mxu0
    %v941 = vadd.f32 0.0, %v940
    %v942 = vpop.f32.mrf.mxu0
    %v943 = vpop.f32.mrf.mxu0
    %944 = vdwg.mxu0
    %v945 = vadd.f32 %v764, %v898
    %v946 = vadd.f32 %v765, %v900
    %v947 = vadd.f32 %v766, %v939
    %v948 = vadd.f32 %v767, %v941
    %v949 = vld [vmem:[%s4] ss:$4 sm:$0xf]
    %v951 = vlaneseq
    %v952 = vshrl.u32 %v951, 7
    %v953 = vsub.s32 0, %v952
    %v954 = vrot.slane %v949, %v953
    %v955 = vlaneseq
    %v956 = vshrl.u32 %v955, 7
    %v957 = vsub.s32 1, %v956
    %v958 = vrot.slane %v949, %v957
    %v959 = vlaneseq
    %v960 = vshrl.u32 %v959, 7
    %v961 = vsub.s32 2, %v960
    %v962 = vrot.slane %v949, %v961
    %v963 = vlaneseq
    %v964 = vshrl.u32 %v963, 7
    %v965 = vsub.s32 3, %v964
    %v966 = vrot.slane %v949, %v965
    %v971 = vadd.f32 %v945, %v954
    %v972 = vadd.f32 %v946, %v958
    %v973 = vadd.f32 %v947, %v962
    %v974 = vadd.f32 %v948, %v966
    %v975 = vmax.f32 %v971, 0.0
    %v976 = vmax.f32 %v972, 0.0
    %v977 = vmax.f32 %v973, 0.0
    %v978 = vmax.f32 %v974, 0.0
    %v979 = vpack.c.bf16 %v975, %v975
    %v980 = vpack.c.bf16 %v976, %v976
    %v981 = vpack.c.bf16 %v977, %v977
    %v982 = vpack.c.bf16 %v978, %v978
    %v983 = vld [vmem:[#allocation2] sm:$0xff]
    %v984 = vld [vmem:[#allocation2 + $0x8] sm:$0xff]
    %v985 = vld [vmem:[#allocation2 + $0x10] sm:$0xff]
    %v986 = vld [vmem:[#allocation2 + $0x18] sm:$0xff]
    %v987 = vld [vmem:[#allocation2 + $0x20] sm:$0xff]
    %v988 = vld [vmem:[#allocation2 + $0x28] sm:$0xff]
    %v989 = vld [vmem:[#allocation2 + $0x30] sm:$0xff]
    %v990 = vld [vmem:[#allocation2 + $0x38] sm:$0xff]
    %v991 = vld [vmem:[#allocation2 + $0x40] sm:$0xff]
    %v992 = vld [vmem:[#allocation2 + $0x48] sm:$0xff]
    %v993 = vld [vmem:[#allocation2 + $0x50] sm:$0xff]
    %v994 = vld [vmem:[#allocation2 + $0x58] sm:$0xff]
    %v995 = vld [vmem:[#allocation2 + $0x60] sm:$0xff]
    %v996 = vld [vmem:[#allocation2 + $0x68] sm:$0xff]
    %v997 = vld [vmem:[#allocation2 + $0x70] sm:$0xff]
    %v998 = vld [vmem:[#allocation2 + $0x78] sm:$0xff]
    %v999 = vld [vmem:[#allocation2 + $0x80] sm:$0xff]
    %v1000 = vld [vmem:[#allocation2 + $0x88] sm:$0xff]
    %v1001 = vld [vmem:[#allocation2 + $0x90] sm:$0xff]
    %v1002 = vld [vmem:[#allocation2 + $0x98] sm:$0xff]
    %v1003 = vld [vmem:[#allocation2 + $0xa0] sm:$0xff]
    %v1004 = vld [vmem:[#allocation2 + $0xa8] sm:$0xff]
    %v1005 = vld [vmem:[#allocation2 + $0xb0] sm:$0xff]
    %v1006 = vld [vmem:[#allocation2 + $0xb8] sm:$0xff]
    %v1007 = vld [vmem:[#allocation2 + $0xc0] sm:$0xff]
    %v1008 = vld [vmem:[#allocation2 + $0xc8] sm:$0xff]
    %v1009 = vld [vmem:[#allocation2 + $0xd0] sm:$0xff]
    %v1010 = vld [vmem:[#allocation2 + $0xd8] sm:$0xff]
    %v1011 = vld [vmem:[#allocation2 + $0xe0] sm:$0xff]
    %v1012 = vld [vmem:[#allocation2 + $0xe8] sm:$0xff]
    %v1013 = vld [vmem:[#allocation2 + $0xf0] sm:$0xff]
    %v1014 = vld [vmem:[#allocation2 + $0xf8] sm:$0xff]
    %v1015 = vld [vmem:[#allocation2 + $0x100] sm:$0xff]
    %v1016 = vld [vmem:[#allocation2 + $0x108] sm:$0xff]
    %v1017 = vld [vmem:[#allocation2 + $0x110] sm:$0xff]
    %v1018 = vld [vmem:[#allocation2 + $0x118] sm:$0xff]
    %v1019 = vld [vmem:[#allocation2 + $0x120] sm:$0xff]
    %v1020 = vld [vmem:[#allocation2 + $0x128] sm:$0xff]
    %v1021 = vld [vmem:[#allocation2 + $0x130] sm:$0xff]
    %v1022 = vld [vmem:[#allocation2 + $0x138] sm:$0xff]
    %v1023 = vld [vmem:[#allocation2 + $0x140] sm:$0xff]
    %v1024 = vld [vmem:[#allocation2 + $0x148] sm:$0xff]
    %v1025 = vld [vmem:[#allocation2 + $0x150] sm:$0xff]
    %v1026 = vld [vmem:[#allocation2 + $0x158] sm:$0xff]
    %v1027 = vld [vmem:[#allocation2 + $0x160] sm:$0xff]
    %v1028 = vld [vmem:[#allocation2 + $0x168] sm:$0xff]
    %v1029 = vld [vmem:[#allocation2 + $0x170] sm:$0xff]
    %v1030 = vld [vmem:[#allocation2 + $0x178] sm:$0xff]
    %v1031 = vld [vmem:[#allocation2 + $0x180] sm:$0xff]
    %v1032 = vld [vmem:[#allocation2 + $0x188] sm:$0xff]
    %v1033 = vld [vmem:[#allocation2 + $0x190] sm:$0xff]
    %v1034 = vld [vmem:[#allocation2 + $0x198] sm:$0xff]
    %v1035 = vld [vmem:[#allocation2 + $0x1a0] sm:$0xff]
    %v1036 = vld [vmem:[#allocation2 + $0x1a8] sm:$0xff]
    %v1037 = vld [vmem:[#allocation2 + $0x1b0] sm:$0xff]
    %v1038 = vld [vmem:[#allocation2 + $0x1b8] sm:$0xff]
    %v1039 = vld [vmem:[#allocation2 + $0x1c0] sm:$0xff]
    %v1040 = vld [vmem:[#allocation2 + $0x1c8] sm:$0xff]
    %v1041 = vld [vmem:[#allocation2 + $0x1d0] sm:$0xff]
    %v1042 = vld [vmem:[#allocation2 + $0x1d8] sm:$0xff]
    %v1043 = vld [vmem:[#allocation2 + $0x1e0] sm:$0xff]
    %v1044 = vld [vmem:[#allocation2 + $0x1e8] sm:$0xff]
    %v1045 = vld [vmem:[#allocation2 + $0x1f0] sm:$0xff]
    %v1046 = vld [vmem:[#allocation2 + $0x1f8] sm:$0xff]
    %v1047 = vld [vmem:[#allocation2 + $0x200] sm:$0xff]
    %v1048 = vld [vmem:[#allocation2 + $0x208] sm:$0xff]
    %v1049 = vld [vmem:[#allocation2 + $0x210] sm:$0xff]
    %v1050 = vld [vmem:[#allocation2 + $0x218] sm:$0xff]
    %v1051 = vld [vmem:[#allocation2 + $0x220] sm:$0xff]
    %v1052 = vld [vmem:[#allocation2 + $0x228] sm:$0xff]
    %v1053 = vld [vmem:[#allocation2 + $0x230] sm:$0xff]
    %v1054 = vld [vmem:[#allocation2 + $0x238] sm:$0xff]
    %v1055 = vld [vmem:[#allocation2 + $0x240] sm:$0xff]
    %v1056 = vld [vmem:[#allocation2 + $0x248] sm:$0xff]
    %v1057 = vld [vmem:[#allocation2 + $0x250] sm:$0xff]
    %v1058 = vld [vmem:[#allocation2 + $0x258] sm:$0xff]
    %v1059 = vld [vmem:[#allocation2 + $0x260] sm:$0xff]
    %v1060 = vld [vmem:[#allocation2 + $0x268] sm:$0xff]
    %v1061 = vld [vmem:[#allocation2 + $0x270] sm:$0xff]
    %v1062 = vld [vmem:[#allocation2 + $0x278] sm:$0xff]
    %v1063 = vld [vmem:[#allocation2 + $0x280] sm:$0xff]
    %v1064 = vld [vmem:[#allocation2 + $0x288] sm:$0xff]
    %v1065 = vld [vmem:[#allocation2 + $0x290] sm:$0xff]
    %v1066 = vld [vmem:[#allocation2 + $0x298] sm:$0xff]
    %v1067 = vld [vmem:[#allocation2 + $0x2a0] sm:$0xff]
    %v1068 = vld [vmem:[#allocation2 + $0x2a8] sm:$0xff]
    %v1069 = vld [vmem:[#allocation2 + $0x2b0] sm:$0xff]
    %v1070 = vld [vmem:[#allocation2 + $0x2b8] sm:$0xff]
    %v1071 = vld [vmem:[#allocation2 + $0x2c0] sm:$0xff]
    %v1072 = vld [vmem:[#allocation2 + $0x2c8] sm:$0xff]
    %v1073 = vld [vmem:[#allocation2 + $0x2d0] sm:$0xff]
    %v1074 = vld [vmem:[#allocation2 + $0x2d8] sm:$0xff]
    %v1075 = vld [vmem:[#allocation2 + $0x2e0] sm:$0xff]
    %v1076 = vld [vmem:[#allocation2 + $0x2e8] sm:$0xff]
    %v1077 = vld [vmem:[#allocation2 + $0x2f0] sm:$0xff]
    %v1078 = vld [vmem:[#allocation2 + $0x2f8] sm:$0xff]
    %v1079 = vld [vmem:[#allocation2 + $0x300] sm:$0xff]
    %v1080 = vld [vmem:[#allocation2 + $0x308] sm:$0xff]
    %v1081 = vld [vmem:[#allocation2 + $0x310] sm:$0xff]
    %v1082 = vld [vmem:[#allocation2 + $0x318] sm:$0xff]
    %v1083 = vld [vmem:[#allocation2 + $0x320] sm:$0xff]
    %v1084 = vld [vmem:[#allocation2 + $0x328] sm:$0xff]
    %v1085 = vld [vmem:[#allocation2 + $0x330] sm:$0xff]
    %v1086 = vld [vmem:[#allocation2 + $0x338] sm:$0xff]
    %v1087 = vld [vmem:[#allocation2 + $0x340] sm:$0xff]
    %v1088 = vld [vmem:[#allocation2 + $0x348] sm:$0xff]
    %v1089 = vld [vmem:[#allocation2 + $0x350] sm:$0xff]
    %v1090 = vld [vmem:[#allocation2 + $0x358] sm:$0xff]
    %v1091 = vld [vmem:[#allocation2 + $0x360] sm:$0xff]
    %v1092 = vld [vmem:[#allocation2 + $0x368] sm:$0xff]
    %v1093 = vld [vmem:[#allocation2 + $0x370] sm:$0xff]
    %v1094 = vld [vmem:[#allocation2 + $0x378] sm:$0xff]
    %v1095 = vld [vmem:[#allocation2 + $0x380] sm:$0xff]
    %v1096 = vld [vmem:[#allocation2 + $0x388] sm:$0xff]
    %v1097 = vld [vmem:[#allocation2 + $0x390] sm:$0xff]
    %v1098 = vld [vmem:[#allocation2 + $0x398] sm:$0xff]
    %v1099 = vld [vmem:[#allocation2 + $0x3a0] sm:$0xff]
    %v1100 = vld [vmem:[#allocation2 + $0x3a8] sm:$0xff]
    %v1101 = vld [vmem:[#allocation2 + $0x3b0] sm:$0xff]
    %v1102 = vld [vmem:[#allocation2 + $0x3b8] sm:$0xff]
    %v1103 = vld [vmem:[#allocation2 + $0x3c0] sm:$0xff]
    %v1104 = vld [vmem:[#allocation2 + $0x3c8] sm:$0xff]
    %v1105 = vld [vmem:[#allocation2 + $0x3d0] sm:$0xff]
    %v1106 = vld [vmem:[#allocation2 + $0x3d8] sm:$0xff]
    %v1107 = vld [vmem:[#allocation2 + $0x3e0] sm:$0xff]
    %v1108 = vld [vmem:[#allocation2 + $0x3e8] sm:$0xff]
    %v1109 = vld [vmem:[#allocation2 + $0x3f0] sm:$0xff]
    %v1110 = vld [vmem:[#allocation2 + $0x3f8] sm:$0xff]
    %s1111 = scalar_lea.vmem %s4, 1
    %v1112 = vld [vmem:[%s1111] ss:$4 sm:$0xf]
    %v1114 = vlaneseq
    %v1115 = vshrl.u32 %v1114, 7
    %v1116 = vsub.s32 0, %v1115
    %v1117 = vrot.slane %v1112, %v1116
    %v1118 = vlaneseq
    %v1119 = vshrl.u32 %v1118, 7
    %v1120 = vsub.s32 1, %v1119
    %v1121 = vrot.slane %v1112, %v1120
    %v1122 = vlaneseq
    %v1123 = vshrl.u32 %v1122, 7
    %v1124 = vsub.s32 2, %v1123
    %v1125 = vrot.slane %v1112, %v1124
    %v1126 = vlaneseq
    %v1127 = vshrl.u32 %v1126, 7
    %v1128 = vsub.s32 3, %v1127
    %v1129 = vrot.slane %v1112, %v1128
    %v1262 = vunpack.c.l.b16 %v983
    %v1263 = vunpack.c.h.b16 %v983
    %v1264 = vunpack.c.l.b16 %v984
    %v1265 = vunpack.c.h.b16 %v984
    %v1266 = vunpack.c.l.b16 %v985
    %v1267 = vunpack.c.h.b16 %v985
    %v1268 = vunpack.c.l.b16 %v986
    %v1269 = vunpack.c.h.b16 %v986
    %v1270 = vunpack.c.l.b16 %v987
    %v1271 = vunpack.c.h.b16 %v987
    %v1272 = vunpack.c.l.b16 %v988
    %v1273 = vunpack.c.h.b16 %v988
    %v1274 = vunpack.c.l.b16 %v989
    %v1275 = vunpack.c.h.b16 %v989
    %v1276 = vunpack.c.l.b16 %v990
    %v1277 = vunpack.c.h.b16 %v990
    %v1278 = vunpack.c.l.b16 %v991
    %v1279 = vunpack.c.h.b16 %v991
    %v1280 = vunpack.c.l.b16 %v992
    %v1281 = vunpack.c.h.b16 %v992
    %v1282 = vunpack.c.l.b16 %v993
    %v1283 = vunpack.c.h.b16 %v993
    %v1284 = vunpack.c.l.b16 %v994
    %v1285 = vunpack.c.h.b16 %v994
    %v1286 = vunpack.c.l.b16 %v995
    %v1287 = vunpack.c.h.b16 %v995
    %v1288 = vunpack.c.l.b16 %v996
    %v1289 = vunpack.c.h.b16 %v996
    %v1290 = vunpack.c.l.b16 %v997
    %v1291 = vunpack.c.h.b16 %v997
    %v1292 = vunpack.c.l.b16 %v998
    %v1293 = vunpack.c.h.b16 %v998
    %v1294 = vunpack.c.l.b16 %v999
    %v1295 = vunpack.c.h.b16 %v999
    %v1296 = vunpack.c.l.b16 %v1000
    %v1297 = vunpack.c.h.b16 %v1000
    %v1298 = vunpack.c.l.b16 %v1001
    %v1299 = vunpack.c.h.b16 %v1001
    %v1300 = vunpack.c.l.b16 %v1002
    %v1301 = vunpack.c.h.b16 %v1002
    %v1302 = vunpack.c.l.b16 %v1003
    %v1303 = vunpack.c.h.b16 %v1003
    %v1304 = vunpack.c.l.b16 %v1004
    %v1305 = vunpack.c.h.b16 %v1004
    %v1306 = vunpack.c.l.b16 %v1005
    %v1307 = vunpack.c.h.b16 %v1005
    %v1308 = vunpack.c.l.b16 %v1006
    %v1309 = vunpack.c.h.b16 %v1006
    %v1310 = vunpack.c.l.b16 %v1007
    %v1311 = vunpack.c.h.b16 %v1007
    %v1312 = vunpack.c.l.b16 %v1008
    %v1313 = vunpack.c.h.b16 %v1008
    %v1314 = vunpack.c.l.b16 %v1009
    %v1315 = vunpack.c.h.b16 %v1009
    %v1316 = vunpack.c.l.b16 %v1010
    %v1317 = vunpack.c.h.b16 %v1010
    %v1318 = vunpack.c.l.b16 %v1011
    %v1319 = vunpack.c.h.b16 %v1011
    %v1320 = vunpack.c.l.b16 %v1012
    %v1321 = vunpack.c.h.b16 %v1012
    %v1322 = vunpack.c.l.b16 %v1013
    %v1323 = vunpack.c.h.b16 %v1013
    %v1324 = vunpack.c.l.b16 %v1014
    %v1325 = vunpack.c.h.b16 %v1014
    %v1326 = vunpack.c.l.b16 %v1015
    %v1327 = vunpack.c.h.b16 %v1015
    %v1328 = vunpack.c.l.b16 %v1016
    %v1329 = vunpack.c.h.b16 %v1016
    %v1330 = vunpack.c.l.b16 %v1017
    %v1331 = vunpack.c.h.b16 %v1017
    %v1332 = vunpack.c.l.b16 %v1018
    %v1333 = vunpack.c.h.b16 %v1018
    %v1334 = vunpack.c.l.b16 %v1019
    %v1335 = vunpack.c.h.b16 %v1019
    %v1336 = vunpack.c.l.b16 %v1020
    %v1337 = vunpack.c.h.b16 %v1020
    %v1338 = vunpack.c.l.b16 %v1021
    %v1339 = vunpack.c.h.b16 %v1021
    %v1340 = vunpack.c.l.b16 %v1022
    %v1341 = vunpack.c.h.b16 %v1022
    %v1342 = vunpack.c.l.b16 %v1023
    %v1343 = vunpack.c.h.b16 %v1023
    %v1344 = vunpack.c.l.b16 %v1024
    %v1345 = vunpack.c.h.b16 %v1024
    %v1346 = vunpack.c.l.b16 %v1025
    %v1347 = vunpack.c.h.b16 %v1025
    %v1348 = vunpack.c.l.b16 %v1026
    %v1349 = vunpack.c.h.b16 %v1026
    %v1350 = vunpack.c.l.b16 %v1027
    %v1351 = vunpack.c.h.b16 %v1027
    %v1352 = vunpack.c.l.b16 %v1028
    %v1353 = vunpack.c.h.b16 %v1028
    %v1354 = vunpack.c.l.b16 %v1029
    %v1355 = vunpack.c.h.b16 %v1029
    %v1356 = vunpack.c.l.b16 %v1030
    %v1357 = vunpack.c.h.b16 %v1030
    %v1358 = vunpack.c.l.b16 %v1031
    %v1359 = vunpack.c.h.b16 %v1031
    %v1360 = vunpack.c.l.b16 %v1032
    %v1361 = vunpack.c.h.b16 %v1032
    %v1362 = vunpack.c.l.b16 %v1033
    %v1363 = vunpack.c.h.b16 %v1033
    %v1364 = vunpack.c.l.b16 %v1034
    %v1365 = vunpack.c.h.b16 %v1034
    %v1366 = vunpack.c.l.b16 %v1035
    %v1367 = vunpack.c.h.b16 %v1035
    %v1368 = vunpack.c.l.b16 %v1036
    %v1369 = vunpack.c.h.b16 %v1036
    %v1370 = vunpack.c.l.b16 %v1037
    %v1371 = vunpack.c.h.b16 %v1037
    %v1372 = vunpack.c.l.b16 %v1038
    %v1373 = vunpack.c.h.b16 %v1038
    %v1374 = vunpack.c.l.b16 %v1039
    %v1375 = vunpack.c.h.b16 %v1039
    %v1376 = vunpack.c.l.b16 %v1040
    %v1377 = vunpack.c.h.b16 %v1040
    %v1378 = vunpack.c.l.b16 %v1041
    %v1379 = vunpack.c.h.b16 %v1041
    %v1380 = vunpack.c.l.b16 %v1042
    %v1381 = vunpack.c.h.b16 %v1042
    %v1382 = vunpack.c.l.b16 %v1043
    %v1383 = vunpack.c.h.b16 %v1043
    %v1384 = vunpack.c.l.b16 %v1044
    %v1385 = vunpack.c.h.b16 %v1044
    %v1386 = vunpack.c.l.b16 %v1045
    %v1387 = vunpack.c.h.b16 %v1045
    %v1388 = vunpack.c.l.b16 %v1046
    %v1389 = vunpack.c.h.b16 %v1046
    %v1390 = vunpack.c.l.b16 %v1047
    %v1391 = vunpack.c.h.b16 %v1047
    %v1392 = vunpack.c.l.b16 %v1048
    %v1393 = vunpack.c.h.b16 %v1048
    %v1394 = vunpack.c.l.b16 %v1049
    %v1395 = vunpack.c.h.b16 %v1049
    %v1396 = vunpack.c.l.b16 %v1050
    %v1397 = vunpack.c.h.b16 %v1050
    %v1398 = vunpack.c.l.b16 %v1051
    %v1399 = vunpack.c.h.b16 %v1051
    %v1400 = vunpack.c.l.b16 %v1052
    %v1401 = vunpack.c.h.b16 %v1052
    %v1402 = vunpack.c.l.b16 %v1053
    %v1403 = vunpack.c.h.b16 %v1053
    %v1404 = vunpack.c.l.b16 %v1054
    %v1405 = vunpack.c.h.b16 %v1054
    %v1406 = vunpack.c.l.b16 %v1055
    %v1407 = vunpack.c.h.b16 %v1055
    %v1408 = vunpack.c.l.b16 %v1056
    %v1409 = vunpack.c.h.b16 %v1056
    %v1410 = vunpack.c.l.b16 %v1057
    %v1411 = vunpack.c.h.b16 %v1057
    %v1412 = vunpack.c.l.b16 %v1058
    %v1413 = vunpack.c.h.b16 %v1058
    %v1414 = vunpack.c.l.b16 %v1059
    %v1415 = vunpack.c.h.b16 %v1059
    %v1416 = vunpack.c.l.b16 %v1060
    %v1417 = vunpack.c.h.b16 %v1060
    %v1418 = vunpack.c.l.b16 %v1061
    %v1419 = vunpack.c.h.b16 %v1061
    %v1420 = vunpack.c.l.b16 %v1062
    %v1421 = vunpack.c.h.b16 %v1062
    %v1422 = vunpack.c.l.b16 %v1063
    %v1423 = vunpack.c.h.b16 %v1063
    %v1424 = vunpack.c.l.b16 %v1064
    %v1425 = vunpack.c.h.b16 %v1064
    %v1426 = vunpack.c.l.b16 %v1065
    %v1427 = vunpack.c.h.b16 %v1065
    %v1428 = vunpack.c.l.b16 %v1066
    %v1429 = vunpack.c.h.b16 %v1066
    %v1430 = vunpack.c.l.b16 %v1067
    %v1431 = vunpack.c.h.b16 %v1067
    %v1432 = vunpack.c.l.b16 %v1068
    %v1433 = vunpack.c.h.b16 %v1068
    %v1434 = vunpack.c.l.b16 %v1069
    %v1435 = vunpack.c.h.b16 %v1069
    %v1436 = vunpack.c.l.b16 %v1070
    %v1437 = vunpack.c.h.b16 %v1070
    %v1438 = vunpack.c.l.b16 %v1071
    %v1439 = vunpack.c.h.b16 %v1071
    %v1440 = vunpack.c.l.b16 %v1072
    %v1441 = vunpack.c.h.b16 %v1072
    %v1442 = vunpack.c.l.b16 %v1073
    %v1443 = vunpack.c.h.b16 %v1073
    %v1444 = vunpack.c.l.b16 %v1074
    %v1445 = vunpack.c.h.b16 %v1074
    %v1446 = vunpack.c.l.b16 %v1075
    %v1447 = vunpack.c.h.b16 %v1075
    %v1448 = vunpack.c.l.b16 %v1076
    %v1449 = vunpack.c.h.b16 %v1076
    %v1450 = vunpack.c.l.b16 %v1077
    %v1451 = vunpack.c.h.b16 %v1077
    %v1452 = vunpack.c.l.b16 %v1078
    %v1453 = vunpack.c.h.b16 %v1078
    %v1454 = vunpack.c.l.b16 %v1079
    %v1455 = vunpack.c.h.b16 %v1079
    %v1456 = vunpack.c.l.b16 %v1080
    %v1457 = vunpack.c.h.b16 %v1080
    %v1458 = vunpack.c.l.b16 %v1081
    %v1459 = vunpack.c.h.b16 %v1081
    %v1460 = vunpack.c.l.b16 %v1082
    %v1461 = vunpack.c.h.b16 %v1082
    %v1462 = vunpack.c.l.b16 %v1083
    %v1463 = vunpack.c.h.b16 %v1083
    %v1464 = vunpack.c.l.b16 %v1084
    %v1465 = vunpack.c.h.b16 %v1084
    %v1466 = vunpack.c.l.b16 %v1085
    %v1467 = vunpack.c.h.b16 %v1085
    %v1468 = vunpack.c.l.b16 %v1086
    %v1469 = vunpack.c.h.b16 %v1086
    %v1470 = vunpack.c.l.b16 %v1087
    %v1471 = vunpack.c.h.b16 %v1087
    %v1472 = vunpack.c.l.b16 %v1088
    %v1473 = vunpack.c.h.b16 %v1088
    %v1474 = vunpack.c.l.b16 %v1089
    %v1475 = vunpack.c.h.b16 %v1089
    %v1476 = vunpack.c.l.b16 %v1090
    %v1477 = vunpack.c.h.b16 %v1090
    %v1478 = vunpack.c.l.b16 %v1091
    %v1479 = vunpack.c.h.b16 %v1091
    %v1480 = vunpack.c.l.b16 %v1092
    %v1481 = vunpack.c.h.b16 %v1092
    %v1482 = vunpack.c.l.b16 %v1093
    %v1483 = vunpack.c.h.b16 %v1093
    %v1484 = vunpack.c.l.b16 %v1094
    %v1485 = vunpack.c.h.b16 %v1094
    %v1486 = vunpack.c.l.b16 %v1095
    %v1487 = vunpack.c.h.b16 %v1095
    %v1488 = vunpack.c.l.b16 %v1096
    %v1489 = vunpack.c.h.b16 %v1096
    %v1490 = vunpack.c.l.b16 %v1097
    %v1491 = vunpack.c.h.b16 %v1097
    %v1492 = vunpack.c.l.b16 %v1098
    %v1493 = vunpack.c.h.b16 %v1098
    %v1494 = vunpack.c.l.b16 %v1099
    %v1495 = vunpack.c.h.b16 %v1099
    %v1496 = vunpack.c.l.b16 %v1100
    %v1497 = vunpack.c.h.b16 %v1100
    %v1498 = vunpack.c.l.b16 %v1101
    %v1499 = vunpack.c.h.b16 %v1101
    %v1500 = vunpack.c.l.b16 %v1102
    %v1501 = vunpack.c.h.b16 %v1102
    %v1502 = vunpack.c.l.b16 %v1103
    %v1503 = vunpack.c.h.b16 %v1103
    %v1504 = vunpack.c.l.b16 %v1104
    %v1505 = vunpack.c.h.b16 %v1104
    %v1506 = vunpack.c.l.b16 %v1105
    %v1507 = vunpack.c.h.b16 %v1105
    %v1508 = vunpack.c.l.b16 %v1106
    %v1509 = vunpack.c.h.b16 %v1106
    %v1510 = vunpack.c.l.b16 %v1107
    %v1511 = vunpack.c.h.b16 %v1107
    %v1512 = vunpack.c.l.b16 %v1108
    %v1513 = vunpack.c.h.b16 %v1108
    %v1514 = vunpack.c.l.b16 %v1109
    %v1515 = vunpack.c.h.b16 %v1109
    %v1516 = vunpack.c.l.b16 %v1110
    %v1517 = vunpack.c.h.b16 %v1110
    %v1518 = vpack.c.b16 %v1266, %v1262
    %v1519 = vpack.c.b16 %v1267, %v1263
    %v1520 = vpack.c.b16 %v1268, %v1264
    %v1521 = vpack.c.b16 %v1269, %v1265
    %v1522 = vpack.c.b16 %v1274, %v1270
    %v1523 = vpack.c.b16 %v1275, %v1271
    %v1524 = vpack.c.b16 %v1276, %v1272
    %v1525 = vpack.c.b16 %v1277, %v1273
    %v1526 = vpack.c.b16 %v1282, %v1278
    %v1527 = vpack.c.b16 %v1283, %v1279
    %v1528 = vpack.c.b16 %v1284, %v1280
    %v1529 = vpack.c.b16 %v1285, %v1281
    %v1530 = vpack.c.b16 %v1290, %v1286
    %v1531 = vpack.c.b16 %v1291, %v1287
    %v1532 = vpack.c.b16 %v1292, %v1288
    %v1533 = vpack.c.b16 %v1293, %v1289
    %v1534 = vpack.c.b16 %v1298, %v1294
    %v1535 = vpack.c.b16 %v1299, %v1295
    %v1536 = vpack.c.b16 %v1300, %v1296
    %v1537 = vpack.c.b16 %v1301, %v1297
    %v1538 = vpack.c.b16 %v1306, %v1302
    %v1539 = vpack.c.b16 %v1307, %v1303
    %v1540 = vpack.c.b16 %v1308, %v1304
    %v1541 = vpack.c.b16 %v1309, %v1305
    %v1542 = vpack.c.b16 %v1314, %v1310
    %v1543 = vpack.c.b16 %v1315, %v1311
    %v1544 = vpack.c.b16 %v1316, %v1312
    %v1545 = vpack.c.b16 %v1317, %v1313
    %v1546 = vpack.c.b16 %v1322, %v1318
    %v1547 = vpack.c.b16 %v1323, %v1319
    %v1548 = vpack.c.b16 %v1324, %v1320
    %v1549 = vpack.c.b16 %v1325, %v1321
    %v1550 = vpack.c.b16 %v1330, %v1326
    %v1551 = vpack.c.b16 %v1331, %v1327
    %v1552 = vpack.c.b16 %v1332, %v1328
    %v1553 = vpack.c.b16 %v1333, %v1329
    %v1554 = vpack.c.b16 %v1338, %v1334
    %v1555 = vpack.c.b16 %v1339, %v1335
    %v1556 = vpack.c.b16 %v1340, %v1336
    %v1557 = vpack.c.b16 %v1341, %v1337
    %v1558 = vpack.c.b16 %v1346, %v1342
    %v1559 = vpack.c.b16 %v1347, %v1343
    %v1560 = vpack.c.b16 %v1348, %v1344
    %v1561 = vpack.c.b16 %v1349, %v1345
    %v1562 = vpack.c.b16 %v1354, %v1350
    %v1563 = vpack.c.b16 %v1355, %v1351
    %v1564 = vpack.c.b16 %v1356, %v1352
    %v1565 = vpack.c.b16 %v1357, %v1353
    %v1566 = vpack.c.b16 %v1362, %v1358
    %v1567 = vpack.c.b16 %v1363, %v1359
    %v1568 = vpack.c.b16 %v1364, %v1360
    %v1569 = vpack.c.b16 %v1365, %v1361
    %v1570 = vpack.c.b16 %v1370, %v1366
    %v1571 = vpack.c.b16 %v1371, %v1367
    %v1572 = vpack.c.b16 %v1372, %v1368
    %v1573 = vpack.c.b16 %v1373, %v1369
    %v1574 = vpack.c.b16 %v1378, %v1374
    %v1575 = vpack.c.b16 %v1379, %v1375
    %v1576 = vpack.c.b16 %v1380, %v1376
    %v1577 = vpack.c.b16 %v1381, %v1377
    %v1578 = vpack.c.b16 %v1386, %v1382
    %v1579 = vpack.c.b16 %v1387, %v1383
    %v1580 = vpack.c.b16 %v1388, %v1384
    %v1581 = vpack.c.b16 %v1389, %v1385
    %v1582 = vpack.c.b16 %v1394, %v1390
    %v1583 = vpack.c.b16 %v1395, %v1391
    %v1584 = vpack.c.b16 %v1396, %v1392
    %v1585 = vpack.c.b16 %v1397, %v1393
    %v1586 = vpack.c.b16 %v1402, %v1398
    %v1587 = vpack.c.b16 %v1403, %v1399
    %v1588 = vpack.c.b16 %v1404, %v1400
    %v1589 = vpack.c.b16 %v1405, %v1401
    %v1590 = vpack.c.b16 %v1410, %v1406
    %v1591 = vpack.c.b16 %v1411, %v1407
    %v1592 = vpack.c.b16 %v1412, %v1408
    %v1593 = vpack.c.b16 %v1413, %v1409
    %v1594 = vpack.c.b16 %v1418, %v1414
    %v1595 = vpack.c.b16 %v1419, %v1415
    %v1596 = vpack.c.b16 %v1420, %v1416
    %v1597 = vpack.c.b16 %v1421, %v1417
    %v1598 = vpack.c.b16 %v1426, %v1422
    %v1599 = vpack.c.b16 %v1427, %v1423
    %v1600 = vpack.c.b16 %v1428, %v1424
    %v1601 = vpack.c.b16 %v1429, %v1425
    %v1602 = vpack.c.b16 %v1434, %v1430
    %v1603 = vpack.c.b16 %v1435, %v1431
    %v1604 = vpack.c.b16 %v1436, %v1432
    %v1605 = vpack.c.b16 %v1437, %v1433
    %v1606 = vpack.c.b16 %v1442, %v1438
    %v1607 = vpack.c.b16 %v1443, %v1439
    %v1608 = vpack.c.b16 %v1444, %v1440
    %v1609 = vpack.c.b16 %v1445, %v1441
    %v1610 = vpack.c.b16 %v1450, %v1446
    %v1611 = vpack.c.b16 %v1451, %v1447
    %v1612 = vpack.c.b16 %v1452, %v1448
    %v1613 = vpack.c.b16 %v1453, %v1449
    %v1614 = vpack.c.b16 %v1458, %v1454
    %v1615 = vpack.c.b16 %v1459, %v1455
    %v1616 = vpack.c.b16 %v1460, %v1456
    %v1617 = vpack.c.b16 %v1461, %v1457
    %v1618 = vpack.c.b16 %v1466, %v1462
    %v1619 = vpack.c.b16 %v1467, %v1463
    %v1620 = vpack.c.b16 %v1468, %v1464
    %v1621 = vpack.c.b16 %v1469, %v1465
    %v1622 = vpack.c.b16 %v1474, %v1470
    %v1623 = vpack.c.b16 %v1475, %v1471
    %v1624 = vpack.c.b16 %v1476, %v1472
    %v1625 = vpack.c.b16 %v1477, %v1473
    %v1626 = vpack.c.b16 %v1482, %v1478
    %v1627 = vpack.c.b16 %v1483, %v1479
    %v1628 = vpack.c.b16 %v1484, %v1480
    %v1629 = vpack.c.b16 %v1485, %v1481
    %v1630 = vpack.c.b16 %v1490, %v1486
    %v1631 = vpack.c.b16 %v1491, %v1487
    %v1632 = vpack.c.b16 %v1492, %v1488
    %v1633 = vpack.c.b16 %v1493, %v1489
    %v1634 = vpack.c.b16 %v1498, %v1494
    %v1635 = vpack.c.b16 %v1499, %v1495
    %v1636 = vpack.c.b16 %v1500, %v1496
    %v1637 = vpack.c.b16 %v1501, %v1497
    %v1638 = vpack.c.b16 %v1506, %v1502
    %v1639 = vpack.c.b16 %v1507, %v1503
    %v1640 = vpack.c.b16 %v1508, %v1504
    %v1641 = vpack.c.b16 %v1509, %v1505
    %v1642 = vpack.c.b16 %v1514, %v1510
    %v1643 = vpack.c.b16 %v1515, %v1511
    %v1644 = vpack.c.b16 %v1516, %v1512
    %v1645 = vpack.c.b16 %v1517, %v1513
    %1774 = vmatprep.subr.bf16.mxu0 %v1547
    %1775 = vmatpush1.bf16.msra.mxu0 %v1546
    %1776 = vmatprep.subr.bf16.mxu0 %v1543
    %1777 = vmatpush1.bf16.msra.mxu0 %v1542
    %1778 = vmatprep.subr.bf16.mxu0 %v1539
    %1779 = vmatpush1.bf16.msra.mxu0 %v1538
    %1780 = vmatprep.subr.bf16.mxu0 %v1535
    %1781 = vmatpush1.bf16.msra.mxu0 %v1534
    %1782 = vmatprep.subr.bf16.mxu0 %v1531
    %1783 = vmatpush1.bf16.msra.mxu0 %v1530
    %1784 = vmatprep.subr.bf16.mxu0 %v1527
    %1785 = vmatpush1.bf16.msra.mxu0 %v1526
    %1786 = vmatprep.subr.bf16.mxu0 %v1523
    %1787 = vmatpush1.bf16.msra.mxu0 %v1522
    %1788 = vmatprep.subr.bf16.mxu0 %v1519
    %1789 = vmatpush1.bf16.msra.mxu0 %v1518
    %1790 = vmatprep.subr.bf16.mxu0 %v1579
    %1791 = vmatpush2.bf16.msra.mxu0 %v1578
    %1792 = vmatprep.subr.bf16.mxu0 %v1575
    %1793 = vmatpush2.bf16.msra.mxu0 %v1574
    %1794 = vmatprep.subr.bf16.mxu0 %v1571
    %1795 = vmatpush2.bf16.msra.mxu0 %v1570
    %1796 = vmatprep.subr.bf16.mxu0 %v1567
    %1797 = vmatpush2.bf16.msra.mxu0 %v1566
    %1798 = vmatprep.subr.bf16.mxu0 %v1563
    %1799 = vmatpush2.bf16.msra.mxu0 %v1562
    %1800 = vmatprep.subr.bf16.mxu0 %v1559
    %1801 = vmatpush2.bf16.msra.mxu0 %v1558
    %1802 = vmatprep.subr.bf16.mxu0 %v1555
    %1803 = vmatpush2.bf16.msra.mxu0 %v1554
    %1804 = vmatprep.subr.bf16.mxu0 %v1551
    %1805 = vmatpush2.bf16.msra.mxu0 %v1550
    %1806 = vmatprep.mubr.bf16.mxu0 %v980
    %1807 = vmatmul.mubr.bf16.gmra.mxu0 %v979
    %v1808 = vpop.f32.mrf.mxu0
    %v1809 = vadd.f32 %v1117, %v1808
    %v1810 = vpop.f32.mrf.mxu0
    %v1811 = vadd.f32 %v1121, %v1810
    %v1812 = vpop.f32.mrf.mxu0
    %v1813 = vpop.f32.mrf.mxu0
    %1814 = vdwg.mxu0
    %1815 = vmatprep.subr.bf16.mxu0 %v1611
    %1816 = vmatpush1.bf16.msra.mxu0 %v1610
    %1817 = vmatprep.subr.bf16.mxu0 %v1607
    %1818 = vmatpush1.bf16.msra.mxu0 %v1606
    %1819 = vmatprep.subr.bf16.mxu0 %v1603
    %1820 = vmatpush1.bf16.msra.mxu0 %v1602
    %1821 = vmatprep.subr.bf16.mxu0 %v1599
    %1822 = vmatpush1.bf16.msra.mxu0 %v1598
    %1823 = vmatprep.subr.bf16.mxu0 %v1595
    %1824 = vmatpush1.bf16.msra.mxu0 %v1594
    %1825 = vmatprep.subr.bf16.mxu0 %v1591
    %1826 = vmatpush1.bf16.msra.mxu0 %v1590
    %1827 = vmatprep.subr.bf16.mxu0 %v1587
    %1828 = vmatpush1.bf16.msra.mxu0 %v1586
    %1829 = vmatprep.subr.bf16.mxu0 %v1583
    %1830 = vmatpush1.bf16.msra.mxu0 %v1582
    %1831 = vmatprep.subr.bf16.mxu0 %v1643
    %1832 = vmatpush2.bf16.msra.mxu0 %v1642
    %1833 = vmatprep.subr.bf16.mxu0 %v1639
    %1834 = vmatpush2.bf16.msra.mxu0 %v1638
    %1835 = vmatprep.subr.bf16.mxu0 %v1635
    %1836 = vmatpush2.bf16.msra.mxu0 %v1634
    %1837 = vmatprep.subr.bf16.mxu0 %v1631
    %1838 = vmatpush2.bf16.msra.mxu0 %v1630
    %1839 = vmatprep.subr.bf16.mxu0 %v1627
    %1840 = vmatpush2.bf16.msra.mxu0 %v1626
    %1841 = vmatprep.subr.bf16.mxu0 %v1623
    %1842 = vmatpush2.bf16.msra.mxu0 %v1622
    %1843 = vmatprep.subr.bf16.mxu0 %v1619
    %1844 = vmatpush2.bf16.msra.mxu0 %v1618
    %1845 = vmatprep.subr.bf16.mxu0 %v1615
    %1846 = vmatpush2.bf16.msra.mxu0 %v1614
    %1847 = vmatprep.mubr.bf16.mxu0 %v982
    %1848 = vmatmul.mubr.bf16.gmra.mxu0 %v981
    %v1849 = vpop.f32.mrf.mxu0
    %v1850 = vadd.f32 %v1809, %v1849
    %v1851 = vpop.f32.mrf.mxu0
    %v1852 = vadd.f32 %v1811, %v1851
    %v1853 = vpop.f32.mrf.mxu0
    %v1854 = vpop.f32.mrf.mxu0
    %1855 = vdwg.mxu0
    %1856 = vmatprep.subr.bf16.mxu0 %v1549
    %1857 = vmatpush1.bf16.msra.mxu0 %v1548
    %1858 = vmatprep.subr.bf16.mxu0 %v1545
    %1859 = vmatpush1.bf16.msra.mxu0 %v1544
    %1860 = vmatprep.subr.bf16.mxu0 %v1541
    %1861 = vmatpush1.bf16.msra.mxu0 %v1540
    %1862 = vmatprep.subr.bf16.mxu0 %v1537
    %1863 = vmatpush1.bf16.msra.mxu0 %v1536
    %1864 = vmatprep.subr.bf16.mxu0 %v1533
    %1865 = vmatpush1.bf16.msra.mxu0 %v1532
    %1866 = vmatprep.subr.bf16.mxu0 %v1529
    %1867 = vmatpush1.bf16.msra.mxu0 %v1528
    %1868 = vmatprep.subr.bf16.mxu0 %v1525
    %1869 = vmatpush1.bf16.msra.mxu0 %v1524
    %1870 = vmatprep.subr.bf16.mxu0 %v1521
    %1871 = vmatpush1.bf16.msra.mxu0 %v1520
    %1872 = vmatprep.subr.bf16.mxu0 %v1581
    %1873 = vmatpush2.bf16.msra.mxu0 %v1580
    %1874 = vmatprep.subr.bf16.mxu0 %v1577
    %1875 = vmatpush2.bf16.msra.mxu0 %v1576
    %1876 = vmatprep.subr.bf16.mxu0 %v1573
    %1877 = vmatpush2.bf16.msra.mxu0 %v1572
    %1878 = vmatprep.subr.bf16.mxu0 %v1569
    %1879 = vmatpush2.bf16.msra.mxu0 %v1568
    %1880 = vmatprep.subr.bf16.mxu0 %v1565
    %1881 = vmatpush2.bf16.msra.mxu0 %v1564
    %1882 = vmatprep.subr.bf16.mxu0 %v1561
    %1883 = vmatpush2.bf16.msra.mxu0 %v1560
    %1884 = vmatprep.subr.bf16.mxu0 %v1557
    %1885 = vmatpush2.bf16.msra.mxu0 %v1556
    %1886 = vmatprep.subr.bf16.mxu0 %v1553
    %1887 = vmatpush2.bf16.msra.mxu0 %v1552
    %1888 = vmatprep.mubr.bf16.mxu0 %v980
    %1889 = vmatmul.mubr.bf16.gmra.mxu0 %v979
    %v1890 = vpop.f32.mrf.mxu0
    %v1891 = vadd.f32 %v1125, %v1890
    %v1892 = vpop.f32.mrf.mxu0
    %v1893 = vadd.f32 %v1129, %v1892
    %v1894 = vpop.f32.mrf.mxu0
    %v1895 = vpop.f32.mrf.mxu0
    %1896 = vdwg.mxu0
    %1897 = vmatprep.subr.bf16.mxu0 %v1613
    %1898 = vmatpush1.bf16.msra.mxu0 %v1612
    %1899 = vmatprep.subr.bf16.mxu0 %v1609
    %1900 = vmatpush1.bf16.msra.mxu0 %v1608
    %1901 = vmatprep.subr.bf16.mxu0 %v1605
    %1902 = vmatpush1.bf16.msra.mxu0 %v1604
    %1903 = vmatprep.subr.bf16.mxu0 %v1601
    %1904 = vmatpush1.bf16.msra.mxu0 %v1600
    %1905 = vmatprep.subr.bf16.mxu0 %v1597
    %1906 = vmatpush1.bf16.msra.mxu0 %v1596
    %1907 = vmatprep.subr.bf16.mxu0 %v1593
    %1908 = vmatpush1.bf16.msra.mxu0 %v1592
    %1909 = vmatprep.subr.bf16.mxu0 %v1589
    %1910 = vmatpush1.bf16.msra.mxu0 %v1588
    %1911 = vmatprep.subr.bf16.mxu0 %v1585
    %1912 = vmatpush1.bf16.msra.mxu0 %v1584
    %1913 = vmatprep.subr.bf16.mxu0 %v1645
    %1914 = vmatpush2.bf16.msra.mxu0 %v1644
    %1915 = vmatprep.subr.bf16.mxu0 %v1641
    %1916 = vmatpush2.bf16.msra.mxu0 %v1640
    %1917 = vmatprep.subr.bf16.mxu0 %v1637
    %1918 = vmatpush2.bf16.msra.mxu0 %v1636
    %1919 = vmatprep.subr.bf16.mxu0 %v1633
    %1920 = vmatpush2.bf16.msra.mxu0 %v1632
    %1921 = vmatprep.subr.bf16.mxu0 %v1629
    %1922 = vmatpush2.bf16.msra.mxu0 %v1628
    %1923 = vmatprep.subr.bf16.mxu0 %v1625
    %1924 = vmatpush2.bf16.msra.mxu0 %v1624
    %1925 = vmatprep.subr.bf16.mxu0 %v1621
    %1926 = vmatpush2.bf16.msra.mxu0 %v1620
    %1927 = vmatprep.subr.bf16.mxu0 %v1617
    %1928 = vmatpush2.bf16.msra.mxu0 %v1616
    %1929 = vmatprep.mubr.bf16.mxu0 %v982
    %1930 = vmatmul.mubr.bf16.gmra.mxu0 %v981
    %v1931 = vpop.f32.mrf.mxu0
    %v1932 = vadd.f32 %v1891, %v1931
    %v1933 = vpop.f32.mrf.mxu0
    %v1934 = vadd.f32 %v1893, %v1933
    %v1935 = vpop.f32.mrf.mxu0
    %v1936 = vpop.f32.mrf.mxu0
    %1937 = vdwg.mxu0
    %v1938 = vmax.f32 %v1850, 0.0
    %v1939 = vmax.f32 %v1852, 0.0
    %v1940 = vmax.f32 %v1932, 0.0
    %v1941 = vmax.f32 %v1934, 0.0
    %v1942 = vpack.c.bf16 %v1938, %v1938
    %v1943 = vpack.c.bf16 %v1939, %v1939
    %v1944 = vpack.c.bf16 %v1940, %v1940
    %v1945 = vpack.c.bf16 %v1941, %v1941
    %v1946 = vld [vmem:[%s3] sm:$0xf]
    %v1947 = vld [vmem:[%s3 + $0x4] sm:$0xf]
    %v1948 = vld [vmem:[%s3 + $0x8] sm:$0xf]
    %v1949 = vld [vmem:[%s3 + $0xc] sm:$0xf]
    %v1950 = vld [vmem:[%s3 + $0x10] sm:$0xf]
    %v1951 = vld [vmem:[%s3 + $0x14] sm:$0xf]
    %v1952 = vld [vmem:[%s3 + $0x18] sm:$0xf]
    %v1953 = vld [vmem:[%s3 + $0x1c] sm:$0xf]
    %v1954 = vld [vmem:[%s3 + $0x20] sm:$0xf]
    %v1955 = vld [vmem:[%s3 + $0x24] sm:$0xf]
    %v1956 = vld [vmem:[%s3 + $0x28] sm:$0xf]
    %v1957 = vld [vmem:[%s3 + $0x2c] sm:$0xf]
    %v1958 = vld [vmem:[%s3 + $0x30] sm:$0xf]
    %v1959 = vld [vmem:[%s3 + $0x34] sm:$0xf]
    %v1960 = vld [vmem:[%s3 + $0x38] sm:$0xf]
    %v1961 = vld [vmem:[%s3 + $0x3c] sm:$0xf]
    %v1962 = vld [vmem:[%s3 + $0x40] sm:$0xf]
    %v1963 = vld [vmem:[%s3 + $0x44] sm:$0xf]
    %v1964 = vld [vmem:[%s3 + $0x48] sm:$0xf]
    %v1965 = vld [vmem:[%s3 + $0x4c] sm:$0xf]
    %v1966 = vld [vmem:[%s3 + $0x50] sm:$0xf]
    %v1967 = vld [vmem:[%s3 + $0x54] sm:$0xf]
    %v1968 = vld [vmem:[%s3 + $0x58] sm:$0xf]
    %v1969 = vld [vmem:[%s3 + $0x5c] sm:$0xf]
    %v1970 = vld [vmem:[%s3 + $0x60] sm:$0xf]
    %v1971 = vld [vmem:[%s3 + $0x64] sm:$0xf]
    %v1972 = vld [vmem:[%s3 + $0x68] sm:$0xf]
    %v1973 = vld [vmem:[%s3 + $0x6c] sm:$0xf]
    %v1974 = vld [vmem:[%s3 + $0x70] sm:$0xf]
    %v1975 = vld [vmem:[%s3 + $0x74] sm:$0xf]
    %v1976 = vld [vmem:[%s3 + $0x78] sm:$0xf]
    %v1977 = vld [vmem:[%s3 + $0x7c] sm:$0xf]
    %v1978 = vld [vmem:[%s3 + $0x80] sm:$0xf]
    %v1979 = vld [vmem:[%s3 + $0x84] sm:$0xf]
    %v1980 = vld [vmem:[%s3 + $0x88] sm:$0xf]
    %v1981 = vld [vmem:[%s3 + $0x8c] sm:$0xf]
    %v1982 = vld [vmem:[%s3 + $0x90] sm:$0xf]
    %v1983 = vld [vmem:[%s3 + $0x94] sm:$0xf]
    %v1984 = vld [vmem:[%s3 + $0x98] sm:$0xf]
    %v1985 = vld [vmem:[%s3 + $0x9c] sm:$0xf]
    %v1986 = vld [vmem:[%s3 + $0xa0] sm:$0xf]
    %v1987 = vld [vmem:[%s3 + $0xa4] sm:$0xf]
    %v1988 = vld [vmem:[%s3 + $0xa8] sm:$0xf]
    %v1989 = vld [vmem:[%s3 + $0xac] sm:$0xf]
    %v1990 = vld [vmem:[%s3 + $0xb0] sm:$0xf]
    %v1991 = vld [vmem:[%s3 + $0xb4] sm:$0xf]
    %v1992 = vld [vmem:[%s3 + $0xb8] sm:$0xf]
    %v1993 = vld [vmem:[%s3 + $0xbc] sm:$0xf]
    %v1994 = vld [vmem:[%s3 + $0xc0] sm:$0xf]
    %v1995 = vld [vmem:[%s3 + $0xc4] sm:$0xf]
    %v1996 = vld [vmem:[%s3 + $0xc8] sm:$0xf]
    %v1997 = vld [vmem:[%s3 + $0xcc] sm:$0xf]
    %v1998 = vld [vmem:[%s3 + $0xd0] sm:$0xf]
    %v1999 = vld [vmem:[%s3 + $0xd4] sm:$0xf]
    %v2000 = vld [vmem:[%s3 + $0xd8] sm:$0xf]
    %v2001 = vld [vmem:[%s3 + $0xdc] sm:$0xf]
    %v2002 = vld [vmem:[%s3 + $0xe0] sm:$0xf]
    %v2003 = vld [vmem:[%s3 + $0xe4] sm:$0xf]
    %v2004 = vld [vmem:[%s3 + $0xe8] sm:$0xf]
    %v2005 = vld [vmem:[%s3 + $0xec] sm:$0xf]
    %v2006 = vld [vmem:[%s3 + $0xf0] sm:$0xf]
    %v2007 = vld [vmem:[%s3 + $0xf4] sm:$0xf]
    %v2008 = vld [vmem:[%s3 + $0xf8] sm:$0xf]
    %v2009 = vld [vmem:[%s3 + $0xfc] sm:$0xf]
    %v2010 = vld [vmem:[%s4 + $0x2] sm:$0x1]
    %v2011 = vlaneseq
    %v2012 = vshrl.u32 %v2011, 7
    %v2013 = vsub.s32 0, %v2012
    %v2014 = vrot.slane %v2010, %v2013
    %v2079 = vunpack.c.l.b16 %v1946
    %v2080 = vunpack.c.l.b16 %v1947
    %v2081 = vunpack.c.l.b16 %v1948
    %v2082 = vunpack.c.l.b16 %v1949
    %v2083 = vunpack.c.l.b16 %v1950
    %v2084 = vunpack.c.l.b16 %v1951
    %v2085 = vunpack.c.l.b16 %v1952
    %v2086 = vunpack.c.l.b16 %v1953
    %v2087 = vunpack.c.l.b16 %v1954
    %v2088 = vunpack.c.l.b16 %v1955
    %v2089 = vunpack.c.l.b16 %v1956
    %v2090 = vunpack.c.l.b16 %v1957
    %v2091 = vunpack.c.l.b16 %v1958
    %v2092 = vunpack.c.l.b16 %v1959
    %v2093 = vunpack.c.l.b16 %v1960
    %v2094 = vunpack.c.l.b16 %v1961
    %v2095 = vunpack.c.l.b16 %v1962
    %v2096 = vunpack.c.l.b16 %v1963
    %v2097 = vunpack.c.l.b16 %v1964
    %v2098 = vunpack.c.l.b16 %v1965
    %v2099 = vunpack.c.l.b16 %v1966
    %v2100 = vunpack.c.l.b16 %v1967
    %v2101 = vunpack.c.l.b16 %v1968
    %v2102 = vunpack.c.l.b16 %v1969
    %v2103 = vunpack.c.l.b16 %v1970
    %v2104 = vunpack.c.l.b16 %v1971
    %v2105 = vunpack.c.l.b16 %v1972
    %v2106 = vunpack.c.l.b16 %v1973
    %v2107 = vunpack.c.l.b16 %v1974
    %v2108 = vunpack.c.l.b16 %v1975
    %v2109 = vunpack.c.l.b16 %v1976
    %v2110 = vunpack.c.l.b16 %v1977
    %v2111 = vunpack.c.l.b16 %v1978
    %v2112 = vunpack.c.l.b16 %v1979
    %v2113 = vunpack.c.l.b16 %v1980
    %v2114 = vunpack.c.l.b16 %v1981
    %v2115 = vunpack.c.l.b16 %v1982
    %v2116 = vunpack.c.l.b16 %v1983
    %v2117 = vunpack.c.l.b16 %v1984
    %v2118 = vunpack.c.l.b16 %v1985
    %v2119 = vunpack.c.l.b16 %v1986
    %v2120 = vunpack.c.l.b16 %v1987
    %v2121 = vunpack.c.l.b16 %v1988
    %v2122 = vunpack.c.l.b16 %v1989
    %v2123 = vunpack.c.l.b16 %v1990
    %v2124 = vunpack.c.l.b16 %v1991
    %v2125 = vunpack.c.l.b16 %v1992
    %v2126 = vunpack.c.l.b16 %v1993
    %v2127 = vunpack.c.l.b16 %v1994
    %v2128 = vunpack.c.l.b16 %v1995
    %v2129 = vunpack.c.l.b16 %v1996
    %v2130 = vunpack.c.l.b16 %v1997
    %v2131 = vunpack.c.l.b16 %v1998
    %v2132 = vunpack.c.l.b16 %v1999
    %v2133 = vunpack.c.l.b16 %v2000
    %v2134 = vunpack.c.l.b16 %v2001
    %v2135 = vunpack.c.l.b16 %v2002
    %v2136 = vunpack.c.l.b16 %v2003
    %v2137 = vunpack.c.l.b16 %v2004
    %v2138 = vunpack.c.l.b16 %v2005
    %v2139 = vunpack.c.l.b16 %v2006
    %v2140 = vunpack.c.l.b16 %v2007
    %v2141 = vunpack.c.l.b16 %v2008
    %v2142 = vunpack.c.l.b16 %v2009
    %v2143 = vpack.c.b16 %v2080, %v2079
    %v2144 = vpack.c.b16 %v2082, %v2081
    %v2145 = vpack.c.b16 %v2084, %v2083
    %v2146 = vpack.c.b16 %v2086, %v2085
    %v2147 = vpack.c.b16 %v2088, %v2087
    %v2148 = vpack.c.b16 %v2090, %v2089
    %v2149 = vpack.c.b16 %v2092, %v2091
    %v2150 = vpack.c.b16 %v2094, %v2093
    %v2151 = vpack.c.b16 %v2096, %v2095
    %v2152 = vpack.c.b16 %v2098, %v2097
    %v2153 = vpack.c.b16 %v2100, %v2099
    %v2154 = vpack.c.b16 %v2102, %v2101
    %v2155 = vpack.c.b16 %v2104, %v2103
    %v2156 = vpack.c.b16 %v2106, %v2105
    %v2157 = vpack.c.b16 %v2108, %v2107
    %v2158 = vpack.c.b16 %v2110, %v2109
    %v2159 = vpack.c.b16 %v2112, %v2111
    %v2160 = vpack.c.b16 %v2114, %v2113
    %v2161 = vpack.c.b16 %v2116, %v2115
    %v2162 = vpack.c.b16 %v2118, %v2117
    %v2163 = vpack.c.b16 %v2120, %v2119
    %v2164 = vpack.c.b16 %v2122, %v2121
    %v2165 = vpack.c.b16 %v2124, %v2123
    %v2166 = vpack.c.b16 %v2126, %v2125
    %v2167 = vpack.c.b16 %v2128, %v2127
    %v2168 = vpack.c.b16 %v2130, %v2129
    %v2169 = vpack.c.b16 %v2132, %v2131
    %v2170 = vpack.c.b16 %v2134, %v2133
    %v2171 = vpack.c.b16 %v2136, %v2135
    %v2172 = vpack.c.b16 %v2138, %v2137
    %v2173 = vpack.c.b16 %v2140, %v2139
    %v2174 = vpack.c.b16 %v2142, %v2141
    %2207 = vmatprep.subr.bf16.mxu0 0
    %2208 = vmatpush1.bf16.msra.mxu0 %v2150
    %2209 = vmatprep.subr.bf16.mxu0 0
    %2210 = vmatpush1.bf16.msra.mxu0 %v2149
    %2211 = vmatprep.subr.bf16.mxu0 0
    %2212 = vmatpush1.bf16.msra.mxu0 %v2148
    %2213 = vmatprep.subr.bf16.mxu0 0
    %2214 = vmatpush1.bf16.msra.mxu0 %v2147
    %2215 = vmatprep.subr.bf16.mxu0 0
    %2216 = vmatpush1.bf16.msra.mxu0 %v2146
    %2217 = vmatprep.subr.bf16.mxu0 0
    %2218 = vmatpush1.bf16.msra.mxu0 %v2145
    %2219 = vmatprep.subr.bf16.mxu0 0
    %2220 = vmatpush1.bf16.msra.mxu0 %v2144
    %2221 = vmatprep.subr.bf16.mxu0 0
    %2222 = vmatpush1.bf16.msra.mxu0 %v2143
    %2223 = vmatprep.subr.bf16.mxu0 0
    %2224 = vmatpush2.bf16.msra.mxu0 %v2158
    %2225 = vmatprep.subr.bf16.mxu0 0
    %2226 = vmatpush2.bf16.msra.mxu0 %v2157
    %2227 = vmatprep.subr.bf16.mxu0 0
    %2228 = vmatpush2.bf16.msra.mxu0 %v2156
    %2229 = vmatprep.subr.bf16.mxu0 0
    %2230 = vmatpush2.bf16.msra.mxu0 %v2155
    %2231 = vmatprep.subr.bf16.mxu0 0
    %2232 = vmatpush2.bf16.msra.mxu0 %v2154
    %2233 = vmatprep.subr.bf16.mxu0 0
    %2234 = vmatpush2.bf16.msra.mxu0 %v2153
    %2235 = vmatprep.subr.bf16.mxu0 0
    %2236 = vmatpush2.bf16.msra.mxu0 %v2152
    %2237 = vmatprep.subr.bf16.mxu0 0
    %2238 = vmatpush2.bf16.msra.mxu0 %v2151
    %2239 = vmatprep.mubr.bf16.mxu0 %v1943
    %2240 = vmatmul.mubr.bf16.gmra.mxu0 %v1942
    %v2241 = vpop.f32.mrf.mxu0
    %v2242 = vadd.f32 %v2014, %v2241
    %v2243 = vpop.f32.mrf.mxu0
    %v2244 = vpop.f32.mrf.mxu0
    %v2245 = vpop.f32.mrf.mxu0
    %2246 = vdwg.mxu0
    %2247 = vmatprep.subr.bf16.mxu0 0
    %2248 = vmatpush1.bf16.msra.mxu0 %v2166
    %2249 = vmatprep.subr.bf16.mxu0 0
    %2250 = vmatpush1.bf16.msra.mxu0 %v2165
    %2251 = vmatprep.subr.bf16.mxu0 0
    %2252 = vmatpush1.bf16.msra.mxu0 %v2164
    %2253 = vmatprep.subr.bf16.mxu0 0
    %2254 = vmatpush1.bf16.msra.mxu0 %v2163
    %2255 = vmatprep.subr.bf16.mxu0 0
    %2256 = vmatpush1.bf16.msra.mxu0 %v2162
    %2257 = vmatprep.subr.bf16.mxu0 0
    %2258 = vmatpush1.bf16.msra.mxu0 %v2161
    %2259 = vmatprep.subr.bf16.mxu0 0
    %2260 = vmatpush1.bf16.msra.mxu0 %v2160
    %2261 = vmatprep.subr.bf16.mxu0 0
    %2262 = vmatpush1.bf16.msra.mxu0 %v2159
    %2263 = vmatprep.subr.bf16.mxu0 0
    %2264 = vmatpush2.bf16.msra.mxu0 %v2174
    %2265 = vmatprep.subr.bf16.mxu0 0
    %2266 = vmatpush2.bf16.msra.mxu0 %v2173
    %2267 = vmatprep.subr.bf16.mxu0 0
    %2268 = vmatpush2.bf16.msra.mxu0 %v2172
    %2269 = vmatprep.subr.bf16.mxu0 0
    %2270 = vmatpush2.bf16.msra.mxu0 %v2171
    %2271 = vmatprep.subr.bf16.mxu0 0
    %2272 = vmatpush2.bf16.msra.mxu0 %v2170
    %2273 = vmatprep.subr.bf16.mxu0 0
    %2274 = vmatpush2.bf16.msra.mxu0 %v2169
    %2275 = vmatprep.subr.bf16.mxu0 0
    %2276 = vmatpush2.bf16.msra.mxu0 %v2168
    %2277 = vmatprep.subr.bf16.mxu0 0
    %2278 = vmatpush2.bf16.msra.mxu0 %v2167
    %2279 = vmatprep.mubr.bf16.mxu0 %v1945
    %2280 = vmatmul.mubr.bf16.gmra.mxu0 %v1944
    %v2281 = vpop.f32.mrf.mxu0
    %v2282 = vadd.f32 %v2242, %v2281
    %v2283 = vpop.f32.mrf.mxu0
    %v2284 = vpop.f32.mrf.mxu0
    %v2285 = vpop.f32.mrf.mxu0
    %2286 = vdwg.mxu0
    %2287 = vst.msk [vmem:[%s5] sm:$0xff] %vm329, %v2282
    // Predicated region
    $region26: #{lin1_forward.1} parent=1 // pred_check
      _
    $region27: #{lin1_forward.1} parent=1 // pred_check_branch
      %2289 = sbr.rel (0) target = $region29
    $region28: #{lin1_forward.1} parent=1 // pred_region
      _
    $region29: #{lin1_forward.1} parent=1 // pred_fallthru
      _
    // Predicated region
    $region30: #{lin1_forward.1} parent=1 // pred_check
      _
    $region31: #{lin1_forward.1} parent=1 // pred_check_branch
      %2291 = sbr.rel (0) target = $region33
    $region32: #{lin1_forward.1} parent=1 // pred_region
      _
    $region33: #{lin1_forward.1} parent=1 // pred_fallthru
      _
    %2292 = vsyncpa [#allocation3], 1

</llo_original>
